<compile_context>
chip_gen: v5e
topology: v5e:2x2
jax: 0.10.0
libtpu: 0.0.40
codegen_flags: <defaults>
</compile_context>

<pallas_src>
import functools

import jax
import jax.numpy as jnp
from jax.experimental import pallas as pl
from jax.experimental.pallas import tpu as pltpu


# ----------------------------------------------------------------------------
# Pallas kernel: one grid step == one batch sample, channels on sublanes,
# flattened H*W on lanes.
# ----------------------------------------------------------------------------
def enblock_kernel(x_ref, w1t_ref, hp_ref, w3m_ref, b3r_ref, w4m_ref, b4r_ref,
                   w5t_ref, bo_ref, o_ref, *, H, W, residual, ew_dtype,
                   mm_dtype):
    HW = H * W
    f32 = jnp.float32

    x = x_ref[0]                                      # (C_in, HW), io dtype
    hp = hp_ref[...]                                  # (C_hid, 16) f32 packed:
                                                      #  [b1, b2, 9 taps*s2, pad]

    # --- conv1: 1x1 expand (MXU, BN1 scale pre-folded into w1t) + bias + ReLU --
    y = jnp.dot(w1t_ref[...], x.astype(mm_dtype),
                preferred_element_type=f32)           # (C_hid, HW) f32 accum
    y = jnp.maximum(y + hp[:, 0:1], 0.0).astype(ew_dtype)

    # --- conv2: depthwise 3x3, padding=1, stride=1 (BN2 scale folded in taps) --
    # 9 shifted MACs; shifts are lane rotations (XLU slot), boundaries masked.
    taps = hp[:, 2:11].astype(ew_dtype)               # (C_hid, 9)
    lane = jax.lax.broadcasted_iota(jnp.int32, (1, HW), 1)
    if (W & (W - 1)) == 0:                            # power-of-two fast path
        col = jnp.bitwise_and(lane, W - 1)
    else:
        col = lane % W
    up_ok = lane >= W                                 # h - 1 >= 0
    down_ok = lane < (H - 1) * W                      # h + 1 <  H
    left_ok = col >= 1                                # w - 1 >= 0
    right_ok = col < (W - 1)                          # w + 1 <  W

    acc = y * taps[:, 4:5]                            # centre tap: no zero-fill
    k = 0
    for dh in (-1, 0, 1):
        for dw in (-1, 0, 1):
            if dh == 0 and dw == 0:
                k += 1
                continue
            off = dh * W + dw
            v = pltpu.roll(y, shift=(-off) % HW, axis=1)
            mask = None
            if dh == -1:
                mask = up_ok
            elif dh == 1:
                mask = down_ok
            if dw == -1:
                mask = left_ok if mask is None else jnp.logical_and(mask, left_ok)
            elif dw == 1:
                mask = right_ok if mask is None else jnp.logical_and(mask, right_ok)
            if mask is not None:
                v = jnp.where(mask, v, 0.0)
            acc = acc + v * taps[:, k:k + 1]          # per-channel tap (s2 folded)
            k += 1
    y = jnp.maximum(acc + hp[:, 1:2].astype(ew_dtype), 0.0)   # BN2 bias + ReLU

    # --- squeeze & excitation, row-vector form, all on the MXU -----------------
    # Channel mean as a (1, C_hid) row via ones @ y^T (flash-style NT matmul with
    # f32 accumulation); the gate never touches the (C_hid, HW) array.
    y_mm = y.astype(mm_dtype)                         # no-op when ew == mm dtype
    nt = (((1,), (1,)), ((), ()))                     # contract last dims: A @ B^T
    ones_row = jnp.full((1, HW), 1.0, dtype=y_mm.dtype)
    s_row = jax.lax.dot_general(ones_row, y_mm, nt,
                                preferred_element_type=f32) * (1.0 / HW)
    t_row = jnp.maximum(
        jnp.dot(s_row, w3m_ref[...], preferred_element_type=f32) + b3r_ref[...],
        0.0)                                          # (1, C_se)
    gate = jax.nn.sigmoid(
        jnp.dot(t_row, w4m_ref[...], preferred_element_type=f32) + b4r_ref[...])
                                                      # (1, C_hid), EUP sigmoid

    # --- conv5: 1x1 project (MXU); BN3 scale pre-folded, SE gate folded into
    # the (C_out, C_hid) weight columns instead of gating y ---------------------
    w5g = w5t_ref[...] * gate.astype(w5t_ref.dtype)   # tiny (C_out, C_hid) scale
    out = jnp.dot(w5g, y_mm, preferred_element_type=f32) + bo_ref[...]

    # --- residual (Dropout2d == identity in eval mode) -------------------------
    if residual:
        out = out + x.astype(f32)

    o_ref[0] = out.astype(o_ref.dtype)


# ----------------------------------------------------------------------------
# Wrapper: NCHW in/out (reshapes only, no transposes), BlockSpecs / grid.
# ----------------------------------------------------------------------------
def enblock_forward(x_nchw, kp, *, ew_dtype=jnp.bfloat16):
    N, C_in, H, W = x_nchw.shape
    HW = H * W
    x = x_nchw.reshape(N, C_in, HW)           # free: NCHW is contiguous this way
    C_hid = kp["w1t"].shape[0]
    C_se = kp["w3m"].shape[1]
    C_out = kp["w5t"].shape[0]
    mm_dtype = kp["w1t"].dtype                # matmul input dtype fixed at pack time
    residual = (C_in == C_out)                # stride==1, kernel 3 -> same HW

    # Constant-index weight specs: fetched once, never re-DMA'd across the grid.
    # TODO(synk): single-buffer these (pl.Buffered(1) / manual copy) at large
    # C_hid on v7x to save VMEM headroom for bigger spatial tiles.
    const = lambda shape: pl.BlockSpec(shape, lambda n: (0,) * len(shape))

    # Scoped-VMEM budget sized to the per-step working set (double-buffered x/out
    # blocks + weights + whole-sample intermediates), clamped under v7x physical.
    io_b = x.dtype.itemsize
    ew_b = jnp.dtype(ew_dtype).itemsize
    mm_b = jnp.dtype(mm_dtype).itemsize
    est = 2 * (C_in + C_out) * HW * io_b
    est += 2 * ((C_hid * C_in + C_out * C_hid) * mm_b
                + (2 * C_hid * C_se + 16 * C_hid + C_hid + C_se + C_out) * 4)
    est += C_hid * HW * (3 * ew_b + mm_b + 4) + C_out * HW * 4
    vmem_limit = max(16 << 20, min(int(1.5 * est) + (1 << 20), 48 << 20))

    out = pl.pallas_call(
        functools.partial(enblock_kernel, H=H, W=W, residual=residual,
                          ew_dtype=ew_dtype, mm_dtype=mm_dtype),
        out_shape=jax.ShapeDtypeStruct((N, C_out, HW), x.dtype),
        grid_spec=pltpu.PrefetchScalarGridSpec(
            num_scalar_prefetch=0,
            grid=(N,),
            in_specs=[
                pl.BlockSpec((1, C_in, HW), lambda n: (n, 0, 0)),   # x
                const((C_hid, C_in)),          # w1^T * s1   (mm dtype)
                const((C_hid, 16)),            # packed: b1, b2, 9 taps * s2
                const((C_hid, C_se)),          # w3 (natural orientation)
                const((1, C_se)),              # b3 row
                const((C_se, C_hid)),          # w4 (natural orientation)
                const((1, C_hid)),             # b4 row
                const((C_out, C_hid)),         # w5^T * s3   (mm dtype)
                const((C_out, 1)),             # BN3 bias column
            ],
            out_specs=pl.BlockSpec((1, C_out, HW), lambda n: (n, 0, 0)),
        ),
        compiler_params=pltpu.CompilerParams(
            dimension_semantics=("parallel",),
            vmem_limit_bytes=vmem_limit),
    )(x, kp["w1t"], kp["hp"], kp["w3m"], kp["b3r"], kp["w4m"], kp["b4r"],
      kp["w5t"], kp["bo"])

    return out.reshape(N, C_out, H, W)


# ----------------------------------------------------------------------------
# Deterministic parameter init (matches ENBlock.__init__ shapes, BN folded).
# ----------------------------------------------------------------------------
def init_params(key, channel_in, channel_out):
    channel_hidden = channel_in * 6
    channel_se = channel_in // 4
    eps = 1e-5
    ks = jax.random.split(key, 13)

    def fold_bn(gamma, beta, mean, var):
        scale = gamma / jnp.sqrt(var + eps)
        bias = beta - mean * scale
        return scale, bias

    def bn(kg, kb, c):
        gamma = 1.0 + 0.1 * jax.random.normal(kg, (c,), jnp.float32)
        beta = 0.1 * jax.random.normal(kb, (c,), jnp.float32)
        return fold_bn(gamma, beta, jnp.zeros((c,)), jnp.ones((c,)))

    p = {}
    p["w1"] = 0.1 * jax.random.normal(ks[0], (channel_in, channel_hidden), jnp.float32)
    p["s1"], p["b1"] = bn(ks[1], ks[2], channel_hidden)
    p["wdw"] = 0.1 * jax.random.normal(ks[3], (3, 3, channel_hidden), jnp.float32)
    p["s2"], p["b2"] = bn(ks[4], ks[5], channel_hidden)
    p["w3"] = 0.1 * jax.random.normal(ks[6], (channel_hidden, channel_se), jnp.float32)
    p["b3"] = 0.1 * jax.random.normal(ks[7], (channel_se,), jnp.float32)
    p["w4"] = 0.1 * jax.random.normal(ks[8], (channel_se, channel_hidden), jnp.float32)
    p["b4"] = 0.1 * jax.random.normal(ks[9], (channel_hidden,), jnp.float32)
    p["w5"] = 0.1 * jax.random.normal(ks[10], (channel_hidden, channel_out), jnp.float32)
    p["s3"], p["bo"] = bn(ks[11], ks[12], channel_out)
    return p


# Pack raw params into the kernel layout, folding all BN scales into the
# adjacent linear weights / taps and pre-casting the MXU weights.
def pack_params(p, *, matmul_dtype=jnp.bfloat16):
    C_hid = p["w1"].shape[1]
    w1t = (p["w1"].T * p["s1"][:, None]).astype(matmul_dtype)        # (C_hid, C_in)
    w5t = (p["w5"].T * p["s3"][:, None]).astype(matmul_dtype)        # (C_out, C_hid)
    taps = (p["wdw"] * p["s2"][None, None, :]).reshape(9, C_hid).T   # (C_hid, 9)
    hp = jnp.zeros((C_hid, 16), jnp.float32)
    hp = hp.at[:, 0].set(p["b1"])
    hp = hp.at[:, 1].set(p["b2"])
    hp = hp.at[:, 2:11].set(taps)
    return {
        "w1t": w1t,
        "hp": hp,
        "w3m": jnp.asarray(p["w3"], jnp.float32),      # (C_hid, C_se)
        "b3r": p["b3"][None, :].astype(jnp.float32),   # (1, C_se)
        "w4m": jnp.asarray(p["w4"], jnp.float32),      # (C_se, C_hid)
        "b4r": p["b4"][None, :].astype(jnp.float32),   # (1, C_hid)
        "w5t": w5t,
        "bo": p["bo"][:, None].astype(jnp.float32),    # (C_out, 1)
    }


# ----------------------------------------------------------------------------
# Pure-JAX reference (NCHW, same raw params) for correctness checking.
# ----------------------------------------------------------------------------
def enblock_ref(x, p):
    N, C_in, H, W = x.shape
    y = jnp.einsum("nchw,cd->ndhw", x, p["w1"], precision="highest")
    y = jax.nn.relu(y * p["s1"][None, :, None, None] + p["b1"][None, :, None, None])
    ypad = jnp.pad(y, ((0, 0), (0, 0), (1, 1), (1, 1)))
    acc = jnp.zeros_like(y)
    for i in range(3):
        for j in range(3):
            acc = acc + ypad[:, :, i:i + H, j:j + W] * p["wdw"][i, j][None, :, None, None]
    y = jax.nn.relu(acc * p["s2"][None, :, None, None] + p["b2"][None, :, None, None])
    s = jnp.mean(y.reshape(N, -1, H * W), axis=2)                 # (N, C_hid)
    s = jax.nn.relu(s @ p["w3"] + p["b3"])
    s = jax.nn.sigmoid(s @ p["w4"] + p["b4"])
    y = y * s[:, :, None, None]
    out = jnp.einsum("nchw,cd->ndhw", y, p["w5"], precision="highest")
    out = out * p["s3"][None, :, None, None] + p["bo"][None, :, None, None]
    if out.shape == x.shape:
        out = out + x
    return out


if __name__ == "__main__":
    key = jax.random.PRNGKey(0)
    N, C_in, H, W = 2, 8, 16, 16
    C_out = 8                                      # == C_in -> residual branch taken

    params = init_params(key, C_in, C_out)
    x = jax.random.normal(jax.random.fold_in(key, 999), (N, C_in, H, W), jnp.float32)
    ref = enblock_ref(x, params)

    # f32 everywhere (v5e-safe elementwise path + f32 MXU inputs), tight tolerance.
    kp_f32 = pack_params(params, matmul_dtype=jnp.float32)
    out_f32 = jax.block_until_ready(enblock_forward(x, kp_f32, ew_dtype=jnp.float32))
    assert out_f32.shape == (N, C_out, H, W), out_f32.shape
    assert jnp.allclose(out_f32, ref, rtol=2e-3, atol=2e-3), \
        float(jnp.max(jnp.abs(out_f32 - ref)))

    # Default path: bf16 MXU inputs + bf16 elementwise/depthwise (v6e/v7x).
    kp_bf16 = pack_params(params)
    out_bf16 = jax.block_until_ready(enblock_forward(x, kp_bf16))
    assert jnp.allclose(out_bf16, ref, rtol=2e-2, atol=2e-2), \
        float(jnp.max(jnp.abs(out_bf16 - ref)))

    print("KERNEL_OK")
</pallas_src>

<mosaic_0001>
module attributes {stable_mosaic.version = 11 : i64} {
  func.func @enblock_kernel(%arg0: i32, %arg1: memref<1x8x256xf32, #tpu.memory_space<vmem>>, %arg2: memref<48x8xf32, #tpu.memory_space<vmem>>, %arg3: memref<48x16xf32, #tpu.memory_space<vmem>>, %arg4: memref<48x2xf32, #tpu.memory_space<vmem>>, %arg5: memref<1x2xf32, #tpu.memory_space<vmem>>, %arg6: memref<2x48xf32, #tpu.memory_space<vmem>>, %arg7: memref<1x48xf32, #tpu.memory_space<vmem>>, %arg8: memref<8x48xf32, #tpu.memory_space<vmem>>, %arg9: memref<8x1xf32, #tpu.memory_space<vmem>>, %arg10: memref<1x8x256xf32, #tpu.memory_space<vmem>>) attributes {dimension_semantics = [#tpu.dimension_semantics<parallel>], iteration_bounds = array<i64: 2>, scalar_prefetch = 0 : i64, scratch_operands = 0 : i64, tpu.core_type = #tpu.core_type<tc>, window_params = [{transform_indices = @transform_0, window_bounds = array<i64: 1, 8, 256>}, {pipeline_mode = #tpu.pipeline_mode<synchronous>, transform_indices = @transform_1, window_bounds = array<i64: 48, 8>}, {pipeline_mode = #tpu.pipeline_mode<synchronous>, transform_indices = @transform_2, window_bounds = array<i64: 48, 16>}, {pipeline_mode = #tpu.pipeline_mode<synchronous>, transform_indices = @transform_3, window_bounds = array<i64: 48, 2>}, {pipeline_mode = #tpu.pipeline_mode<synchronous>, transform_indices = @transform_4, window_bounds = array<i64: 1, 2>}, {pipeline_mode = #tpu.pipeline_mode<synchronous>, transform_indices = @transform_5, window_bounds = array<i64: 2, 48>}, {pipeline_mode = #tpu.pipeline_mode<synchronous>, transform_indices = @transform_6, window_bounds = array<i64: 1, 48>}, {pipeline_mode = #tpu.pipeline_mode<synchronous>, transform_indices = @transform_7, window_bounds = array<i64: 8, 48>}, {pipeline_mode = #tpu.pipeline_mode<synchronous>, transform_indices = @transform_8, window_bounds = array<i64: 8, 1>}, {transform_indices = @transform_9, window_bounds = array<i64: 1, 8, 256>}]} {
    %c0 = arith.constant 0 : index
    %c0_0 = arith.constant 0 : index
    %c0_1 = arith.constant 0 : index
    %0 = vector.load %arg1[%c0, %c0_0, %c0_1] : memref<1x8x256xf32, #tpu.memory_space<vmem>>, vector<1x8x256xf32>
    %1 = vector.shape_cast %0 : vector<1x8x256xf32> to vector<8x256xf32>
    %c0_2 = arith.constant 0 : index
    %c0_3 = arith.constant 0 : index
    %2 = vector.load %arg3[%c0_2, %c0_3] : memref<48x16xf32, #tpu.memory_space<vmem>>, vector<48x16xf32>
    %c0_4 = arith.constant 0 : index
    %c0_5 = arith.constant 0 : index
    %3 = vector.load %arg2[%c0_4, %c0_5] : memref<48x8xf32, #tpu.memory_space<vmem>>, vector<48x8xf32>
    %cst = arith.constant dense<0.000000e+00> : vector<48x256xf32>
    %4 = tpu.matmul %3, %1, %cst {dimension_numbers = #tpu.dot_dimension_numbers<[1], [0], [0], [1], [0, 0, 1, 1], [], []>} : vector<48x8xf32>, vector<8x256xf32>, vector<48x256xf32> -> vector<48x256xf32>
    %5 = vector.extract_strided_slice %2 {offsets = [0, 0], sizes = [48, 1], strides = [1, 1]} : vector<48x16xf32> to vector<48x1xf32>
    %6 = vector.broadcast %5 : vector<48x1xf32> to vector<48x256xf32>
    %7 = arith.addf %4, %6 : vector<48x256xf32>
    %cst_6 = arith.constant 0.000000e+00 : f32
    %8 = vector.broadcast %cst_6 : f32 to vector<48x256xf32>
    %9 = arith.maximumf %7, %8 : vector<48x256xf32>
    %10 = vector.extract_strided_slice %2 {offsets = [0, 2], sizes = [48, 9], strides = [1, 1]} : vector<48x16xf32> to vector<48x9xf32>
    %11 = tpu.iota {dimensions = array<i32: 1>} : vector<1x256xi32>
    %c15_i32 = arith.constant 15 : i32
    %12 = vector.broadcast %c15_i32 : i32 to vector<1x256xi32>
    %13 = arith.andi %11, %12 : vector<1x256xi32>
    %c16_i32 = arith.constant 16 : i32
    %14 = vector.broadcast %c16_i32 : i32 to vector<1x256xi32>
    %15 = arith.cmpi sge, %11, %14 : vector<1x256xi32>
    %c240_i32 = arith.constant 240 : i32
    %16 = vector.broadcast %c240_i32 : i32 to vector<1x256xi32>
    %17 = arith.cmpi slt, %11, %16 : vector<1x256xi32>
    %c1_i32 = arith.constant 1 : i32
    %18 = vector.broadcast %c1_i32 : i32 to vector<1x256xi32>
    %19 = arith.cmpi sge, %13, %18 : vector<1x256xi32>
    %c15_i32_7 = arith.constant 15 : i32
    %20 = vector.broadcast %c15_i32_7 : i32 to vector<1x256xi32>
    %21 = arith.cmpi slt, %13, %20 : vector<1x256xi32>
    %22 = vector.extract_strided_slice %10 {offsets = [0, 4], sizes = [48, 1], strides = [1, 1]} : vector<48x9xf32> to vector<48x1xf32>
    %23 = vector.broadcast %22 : vector<48x1xf32> to vector<48x256xf32>
    %24 = arith.mulf %9, %23 : vector<48x256xf32>
    %c17_i32 = arith.constant 17 : i32
    %25 = tpu.dynamic_rotate %9 by %c17_i32 dim 1 : vector<48x256xf32>, i32 -> vector<48x256xf32>
    %26 = arith.andi %15, %19 : vector<1x256xi1>
    %cst_8 = arith.constant 0.000000e+00 : f32
    %27 = vector.shape_cast %26 : vector<1x256xi1> to vector<1x256xi1>
    %28 = vector.broadcast %27 : vector<1x256xi1> to vector<48x256xi1>
    %29 = vector.broadcast %cst_8 : f32 to vector<48x256xf32>
    %30 = arith.select %28, %25, %29 : vector<48x256xi1>, vector<48x256xf32>
    %31 = vector.extract_strided_slice %10 {offsets = [0, 0], sizes = [48, 1], strides = [1, 1]} : vector<48x9xf32> to vector<48x1xf32>
    %32 = vector.broadcast %31 : vector<48x1xf32> to vector<48x256xf32>
    %33 = arith.mulf %30, %32 : vector<48x256xf32>
    %34 = arith.addf %24, %33 : vector<48x256xf32>
    %c16_i32_9 = arith.constant 16 : i32
    %35 = tpu.dynamic_rotate %9 by %c16_i32_9 dim 1 : vector<48x256xf32>, i32 -> vector<48x256xf32>
    %cst_10 = arith.constant 0.000000e+00 : f32
    %36 = vector.shape_cast %15 : vector<1x256xi1> to vector<1x256xi1>
    %37 = vector.broadcast %36 : vector<1x256xi1> to vector<48x256xi1>
    %38 = vector.broadcast %cst_10 : f32 to vector<48x256xf32>
    %39 = arith.select %37, %35, %38 : vector<48x256xi1>, vector<48x256xf32>
    %40 = vector.extract_strided_slice %10 {offsets = [0, 1], sizes = [48, 1], strides = [1, 1]} : vector<48x9xf32> to vector<48x1xf32>
    %41 = vector.broadcast %40 : vector<48x1xf32> to vector<48x256xf32>
    %42 = arith.mulf %39, %41 : vector<48x256xf32>
    %43 = arith.addf %34, %42 : vector<48x256xf32>
    %c15_i32_11 = arith.constant 15 : i32
    %44 = tpu.dynamic_rotate %9 by %c15_i32_11 dim 1 : vector<48x256xf32>, i32 -> vector<48x256xf32>
    %45 = arith.andi %15, %21 : vector<1x256xi1>
    %cst_12 = arith.constant 0.000000e+00 : f32
    %46 = vector.shape_cast %45 : vector<1x256xi1> to vector<1x256xi1>
    %47 = vector.broadcast %46 : vector<1x256xi1> to vector<48x256xi1>
    %48 = vector.broadcast %cst_12 : f32 to vector<48x256xf32>
    %49 = arith.select %47, %44, %48 : vector<48x256xi1>, vector<48x256xf32>
    %50 = vector.extract_strided_slice %10 {offsets = [0, 2], sizes = [48, 1], strides = [1, 1]} : vector<48x9xf32> to vector<48x1xf32>
    %51 = vector.broadcast %50 : vector<48x1xf32> to vector<48x256xf32>
    %52 = arith.mulf %49, %51 : vector<48x256xf32>
    %53 = arith.addf %43, %52 : vector<48x256xf32>
    %c1_i32_13 = arith.constant 1 : i32
    %54 = tpu.dynamic_rotate %9 by %c1_i32_13 dim 1 : vector<48x256xf32>, i32 -> vector<48x256xf32>
    %cst_14 = arith.constant 0.000000e+00 : f32
    %55 = vector.shape_cast %19 : vector<1x256xi1> to vector<1x256xi1>
    %56 = vector.broadcast %55 : vector<1x256xi1> to vector<48x256xi1>
    %57 = vector.broadcast %cst_14 : f32 to vector<48x256xf32>
    %58 = arith.select %56, %54, %57 : vector<48x256xi1>, vector<48x256xf32>
    %59 = vector.extract_strided_slice %10 {offsets = [0, 3], sizes = [48, 1], strides = [1, 1]} : vector<48x9xf32> to vector<48x1xf32>
    %60 = vector.broadcast %59 : vector<48x1xf32> to vector<48x256xf32>
    %61 = arith.mulf %58, %60 : vector<48x256xf32>
    %62 = arith.addf %53, %61 : vector<48x256xf32>
    %c255_i32 = arith.constant 255 : i32
    %63 = tpu.dynamic_rotate %9 by %c255_i32 dim 1 : vector<48x256xf32>, i32 -> vector<48x256xf32>
    %cst_15 = arith.constant 0.000000e+00 : f32
    %64 = vector.shape_cast %21 : vector<1x256xi1> to vector<1x256xi1>
    %65 = vector.broadcast %64 : vector<1x256xi1> to vector<48x256xi1>
    %66 = vector.broadcast %cst_15 : f32 to vector<48x256xf32>
    %67 = arith.select %65, %63, %66 : vector<48x256xi1>, vector<48x256xf32>
    %68 = vector.extract_strided_slice %10 {offsets = [0, 5], sizes = [48, 1], strides = [1, 1]} : vector<48x9xf32> to vector<48x1xf32>
    %69 = vector.broadcast %68 : vector<48x1xf32> to vector<48x256xf32>
    %70 = arith.mulf %67, %69 : vector<48x256xf32>
    %71 = arith.addf %62, %70 : vector<48x256xf32>
    %c241_i32 = arith.constant 241 : i32
    %72 = tpu.dynamic_rotate %9 by %c241_i32 dim 1 : vector<48x256xf32>, i32 -> vector<48x256xf32>
    %73 = arith.andi %17, %19 : vector<1x256xi1>
    %cst_16 = arith.constant 0.000000e+00 : f32
    %74 = vector.shape_cast %73 : vector<1x256xi1> to vector<1x256xi1>
    %75 = vector.broadcast %74 : vector<1x256xi1> to vector<48x256xi1>
    %76 = vector.broadcast %cst_16 : f32 to vector<48x256xf32>
    %77 = arith.select %75, %72, %76 : vector<48x256xi1>, vector<48x256xf32>
    %78 = vector.extract_strided_slice %10 {offsets = [0, 6], sizes = [48, 1], strides = [1, 1]} : vector<48x9xf32> to vector<48x1xf32>
    %79 = vector.broadcast %78 : vector<48x1xf32> to vector<48x256xf32>
    %80 = arith.mulf %77, %79 : vector<48x256xf32>
    %81 = arith.addf %71, %80 : vector<48x256xf32>
    %c240_i32_17 = arith.constant 240 : i32
    %82 = tpu.dynamic_rotate %9 by %c240_i32_17 dim 1 : vector<48x256xf32>, i32 -> vector<48x256xf32>
    %cst_18 = arith.constant 0.000000e+00 : f32
    %83 = vector.shape_cast %17 : vector<1x256xi1> to vector<1x256xi1>
    %84 = vector.broadcast %83 : vector<1x256xi1> to vector<48x256xi1>
    %85 = vector.broadcast %cst_18 : f32 to vector<48x256xf32>
    %86 = arith.select %84, %82, %85 : vector<48x256xi1>, vector<48x256xf32>
    %87 = vector.extract_strided_slice %10 {offsets = [0, 7], sizes = [48, 1], strides = [1, 1]} : vector<48x9xf32> to vector<48x1xf32>
    %88 = vector.broadcast %87 : vector<48x1xf32> to vector<48x256xf32>
    %89 = arith.mulf %86, %88 : vector<48x256xf32>
    %90 = arith.addf %81, %89 : vector<48x256xf32>
    %c239_i32 = arith.constant 239 : i32
    %91 = tpu.dynamic_rotate %9 by %c239_i32 dim 1 : vector<48x256xf32>, i32 -> vector<48x256xf32>
    %92 = arith.andi %17, %21 : vector<1x256xi1>
    %cst_19 = arith.constant 0.000000e+00 : f32
    %93 = vector.shape_cast %92 : vector<1x256xi1> to vector<1x256xi1>
    %94 = vector.broadcast %93 : vector<1x256xi1> to vector<48x256xi1>
    %95 = vector.broadcast %cst_19 : f32 to vector<48x256xf32>
    %96 = arith.select %94, %91, %95 : vector<48x256xi1>, vector<48x256xf32>
    %97 = vector.extract_strided_slice %10 {offsets = [0, 8], sizes = [48, 1], strides = [1, 1]} : vector<48x9xf32> to vector<48x1xf32>
    %98 = vector.broadcast %97 : vector<48x1xf32> to vector<48x256xf32>
    %99 = arith.mulf %96, %98 : vector<48x256xf32>
    %100 = arith.addf %90, %99 : vector<48x256xf32>
    %101 = vector.extract_strided_slice %2 {offsets = [0, 1], sizes = [48, 1], strides = [1, 1]} : vector<48x16xf32> to vector<48x1xf32>
    %102 = vector.broadcast %101 : vector<48x1xf32> to vector<48x256xf32>
    %103 = arith.addf %100, %102 : vector<48x256xf32>
    %cst_20 = arith.constant 0.000000e+00 : f32
    %104 = vector.broadcast %cst_20 : f32 to vector<48x256xf32>
    %105 = arith.maximumf %103, %104 : vector<48x256xf32>
    %cst_21 = arith.constant 1.000000e+00 : f32
    %106 = vector.broadcast %cst_21 : f32 to vector<1x256xf32>
    %cst_22 = arith.constant dense<0.000000e+00> : vector<1x48xf32>
    %107 = tpu.matmul %106, %105, %cst_22 {dimension_numbers = #tpu.dot_dimension_numbers<[1], [1], [0], [0], [0, 0, 1, 0], [], []>} : vector<1x256xf32>, vector<48x256xf32>, vector<1x48xf32> -> vector<1x48xf32>
    %cst_23 = arith.constant 3.906250e-03 : f32
    %108 = vector.broadcast %cst_23 : f32 to vector<1x48xf32>
    %109 = arith.mulf %107, %108 : vector<1x48xf32>
    %c0_24 = arith.constant 0 : index
    %c0_25 = arith.constant 0 : index
    %110 = vector.load %arg4[%c0_24, %c0_25] : memref<48x2xf32, #tpu.memory_space<vmem>>, vector<48x2xf32>
    %cst_26 = arith.constant dense<0.000000e+00> : vector<1x2xf32>
    %111 = tpu.matmul %109, %110, %cst_26 {dimension_numbers = #tpu.dot_dimension_numbers<[1], [0], [0], [1], [0, 0, 1, 1], [], []>} : vector<1x48xf32>, vector<48x2xf32>, vector<1x2xf32> -> vector<1x2xf32>
    %c0_27 = arith.constant 0 : index
    %c0_28 = arith.constant 0 : index
    %112 = vector.load %arg5[%c0_27, %c0_28] : memref<1x2xf32, #tpu.memory_space<vmem>>, vector<1x2xf32>
    %113 = arith.addf %111, %112 : vector<1x2xf32>
    %cst_29 = arith.constant 0.000000e+00 : f32
    %114 = vector.broadcast %cst_29 : f32 to vector<1x2xf32>
    %115 = arith.maximumf %113, %114 : vector<1x2xf32>
    %c0_30 = arith.constant 0 : index
    %c0_31 = arith.constant 0 : index
    %116 = vector.load %arg6[%c0_30, %c0_31] : memref<2x48xf32, #tpu.memory_space<vmem>>, vector<2x48xf32>
    %cst_32 = arith.constant dense<0.000000e+00> : vector<1x48xf32>
    %117 = tpu.matmul %115, %116, %cst_32 {dimension_numbers = #tpu.dot_dimension_numbers<[1], [0], [0], [1], [0, 0, 1, 1], [], []>} : vector<1x2xf32>, vector<2x48xf32>, vector<1x48xf32> -> vector<1x48xf32>
    %c0_33 = arith.constant 0 : index
    %c0_34 = arith.constant 0 : index
    %118 = vector.load %arg7[%c0_33, %c0_34] : memref<1x48xf32, #tpu.memory_space<vmem>>, vector<1x48xf32>
    %119 = arith.addf %117, %118 : vector<1x48xf32>
    %120 = arith.negf %119 : vector<1x48xf32>
    %121 = math.exp %120 : vector<1x48xf32>
    %cst_35 = arith.constant 1.000000e+00 : f32
    %122 = vector.broadcast %cst_35 : f32 to vector<1x48xf32>
    %123 = arith.addf %122, %121 : vector<1x48xf32>
    %124 = arith.divf %122, %123 : vector<1x48xf32>
    %c0_36 = arith.constant 0 : index
    %c0_37 = arith.constant 0 : index
    %125 = vector.load %arg8[%c0_36, %c0_37] : memref<8x48xf32, #tpu.memory_space<vmem>>, vector<8x48xf32>
    %126 = vector.broadcast %124 : vector<1x48xf32> to vector<8x48xf32>
    %127 = arith.mulf %125, %126 : vector<8x48xf32>
    %cst_38 = arith.constant dense<0.000000e+00> : vector<8x256xf32>
    %128 = tpu.matmul %127, %105, %cst_38 {dimension_numbers = #tpu.dot_dimension_numbers<[1], [0], [0], [1], [0, 0, 1, 1], [], []>} : vector<8x48xf32>, vector<48x256xf32>, vector<8x256xf32> -> vector<8x256xf32>
    %c0_39 = arith.constant 0 : index
    %c0_40 = arith.constant 0 : index
    %129 = vector.load %arg9[%c0_39, %c0_40] : memref<8x1xf32, #tpu.memory_space<vmem>>, vector<8x1xf32>
    %130 = vector.broadcast %129 : vector<8x1xf32> to vector<8x256xf32>
    %131 = arith.addf %128, %130 : vector<8x256xf32>
    %132 = arith.addf %131, %1 : vector<8x256xf32>
    %c0_41 = arith.constant 0 : index
    %c0_42 = arith.constant 0 : index
    %c0_43 = arith.constant 0 : index
    %133 = vector.load %arg10[%c0_41, %c0_42, %c0_43] : memref<1x8x256xf32, #tpu.memory_space<vmem>>, vector<1x8x256xf32>
    %134 = vector.shape_cast %133 : vector<1x8x256xf32> to vector<8x256xf32>
    %135 = vector.shape_cast %132 : vector<8x256xf32> to vector<1x8x256xf32>
    tpu.vector_store %arg10[%c0_41, %c0_42, %c0_43], %135 {strides = array<i32>} : memref<1x8x256xf32, #tpu.memory_space<vmem>>, vector<1x8x256xf32>,
    return
  }
  func.func @transform_0(%arg0: i32) -> (i32, i32, i32) {
    %c0_i32 = arith.constant 0 : i32
    %c0_i32_0 = arith.constant 0 : i32
    %c0_i32_1 = arith.constant 0 : i32
    return %arg0, %c0_i32, %c0_i32_0 : i32, i32, i32
  }
  func.func @transform_1(%arg0: i32) -> (i32, i32) {
    %c0_i32 = arith.constant 0 : i32
    %c0_i32_0 = arith.constant 0 : i32
    %c0_i32_1 = arith.constant 0 : i32
    return %c0_i32, %c0_i32_0 : i32, i32
  }
  func.func @transform_2(%arg0: i32) -> (i32, i32) {
    %c0_i32 = arith.constant 0 : i32
    %c0_i32_0 = arith.constant 0 : i32
    %c0_i32_1 = arith.constant 0 : i32
    return %c0_i32, %c0_i32_0 : i32, i32
  }
  func.func @transform_3(%arg0: i32) -> (i32, i32) {
    %c0_i32 = arith.constant 0 : i32
    %c0_i32_0 = arith.constant 0 : i32
    %c0_i32_1 = arith.constant 0 : i32
    return %c0_i32, %c0_i32_0 : i32, i32
  }
  func.func @transform_4(%arg0: i32) -> (i32, i32) {
    %c0_i32 = arith.constant 0 : i32
    %c0_i32_0 = arith.constant 0 : i32
    %c0_i32_1 = arith.constant 0 : i32
    return %c0_i32, %c0_i32_0 : i32, i32
  }
  func.func @transform_5(%arg0: i32) -> (i32, i32) {
    %c0_i32 = arith.constant 0 : i32
    %c0_i32_0 = arith.constant 0 : i32
    %c0_i32_1 = arith.constant 0 : i32
    return %c0_i32, %c0_i32_0 : i32, i32
  }
  func.func @transform_6(%arg0: i32) -> (i32, i32) {
    %c0_i32 = arith.constant 0 : i32
    %c0_i32_0 = arith.constant 0 : i32
    %c0_i32_1 = arith.constant 0 : i32
    return %c0_i32, %c0_i32_0 : i32, i32
  }
  func.func @transform_7(%arg0: i32) -> (i32, i32) {
    %c0_i32 = arith.constant 0 : i32
    %c0_i32_0 = arith.constant 0 : i32
    %c0_i32_1 = arith.constant 0 : i32
    return %c0_i32, %c0_i32_0 : i32, i32
  }
  func.func @transform_8(%arg0: i32) -> (i32, i32) {
    %c0_i32 = arith.constant 0 : i32
    %c0_i32_0 = arith.constant 0 : i32
    %c0_i32_1 = arith.constant 0 : i32
    return %c0_i32, %c0_i32_0 : i32, i32
  }
  func.func @transform_9(%arg0: i32) -> (i32, i32, i32) {
    %c0_i32 = arith.constant 0 : i32
    %c0_i32_0 = arith.constant 0 : i32
    %c0_i32_1 = arith.constant 0 : i32
    return %arg0, %c0_i32, %c0_i32_0 : i32, i32, i32
  }
}

</mosaic_0001>

<llo_original>
// kernel: tpu_custom_call.1
$region0: #{tpu_custom_call.1}
  #allocation0 [shape = 'u32[]', space=smem, size = 0x4, offset = 0x4, fixed_abs, tag = 'smem constant byte address 0x4 - core index']
  #allocation1 [shape = 'u32[72,128]{1,0:T(1,128)}', space=vmem, size = 0x9000, scoped, tag = 'internal scratch']
  %s0 = inlined_call_operand.vmem [shape: f32[2,8,256], index: 0, kind: input, shape index: {}]
  %s1 = inlined_call_operand.vmem [shape: f32[48,8], index: 1, kind: input, shape index: {}]
  %s2 = inlined_call_operand.vmem [shape: f32[48,16], index: 2, kind: input, shape index: {}]
  %s3 = inlined_call_operand.vmem [shape: f32[48,2], index: 3, kind: input, shape index: {}]
  %s4 = inlined_call_operand.vmem [shape: f32[1,2], index: 4, kind: input, shape index: {}]
  %s5 = inlined_call_operand.vmem [shape: f32[2,48], index: 5, kind: input, shape index: {}]
  %s6 = inlined_call_operand.vmem [shape: f32[1,48], index: 6, kind: input, shape index: {}]
  %s7 = inlined_call_operand.vmem [shape: f32[8,48], index: 7, kind: input, shape index: {}]
  %s8 = inlined_call_operand.vmem [shape: f32[8,1], index: 8, kind: input, shape index: {}]
  %s9 = inlined_call_operand.hbm [shape: f32[2,8,256], index: 9, kind: output, shape index: {}]
  %s10 = sld [smem:[#allocation0]]
  $region69: #{tpu_custom_call.1} parent=0
    _
  %s12 = ssub.s32 1, %s10
  %s13 = scalar_select 0, %s12, %s10
  $region1: #{tpu_custom_call.1} parent=0
    #allocation2 [shape = 'u8[16384]{0}', space=vmem, size = 0x4000, scoped, tag = 'output window, operand 0']
    #allocation3 [shape = 's32[2]{0}', space=sflag, size = 0x8, scoped, tag = 'scoped memory for tpu_custom_call.1']
    %14 = vsyncpa [#allocation3], 0
    %s15 = scalar_lea.sflag [#allocation3], 1
    %16 = vsyncpa %s15, 0
    loop: start=0, step=1, limit=4
    $region2: #{tpu_custom_call.1} parent=1 // loop_pre_header
      _
    $region3: #{tpu_custom_call.1} parent=1 // loop_header
      %s18 = sphi 0, %s22
      %p19 = scmp.ge.s32.totalorder %s18, 4
      %s28 = sphi 0, %s30
      %s31 = sphi 0, %s28
      %s32 = sphi 0, %s31
      %s48 = sphi 0, %s32
      %s52 = sphi 0, %s52
      %s54 = sphi 0, %s52
      %s55 = sphi 0, %s54
      %s69 = sphi 0, %s55
      %s73 = sphi 0, %s73
      %s75 = sphi 0, %s73
      %s76 = sphi 0, %s75
      %s90 = sphi 0, %s76
      %s94 = sphi 0, %s94
      %s96 = sphi 0, %s94
      %s97 = sphi 0, %s96
      %s111 = sphi 0, %s97
      %s115 = sphi 0, %s115
      %s117 = sphi 0, %s115
      %s118 = sphi 0, %s117
      %s132 = sphi 0, %s118
      %s136 = sphi 0, %s136
      %s138 = sphi 0, %s136
      %s139 = sphi 0, %s138
      %s153 = sphi 0, %s139
      %s157 = sphi 0, %s157
      %s159 = sphi 0, %s157
      %s160 = sphi 0, %s159
      %s174 = sphi 0, %s160
      %s178 = sphi 0, %s178
      %s180 = sphi 0, %s178
      %s181 = sphi 0, %s180
      %s195 = sphi 0, %s181
      %s199 = sphi 0, %s199
      %s201 = sphi 0, %s199
      %s202 = sphi 0, %s201
      %s216 = sphi 0, %s202
      %s222 = sphi 0, %s224
      %s225 = sphi 0, %s222
      %s226 = sphi 0, %s225
      %s242 = sphi 0, %s226
    $region4: #{tpu_custom_call.1} parent=1 // loop_header_branch
      %21 = sbr.rel (%p19) target = $region8
    $region5: #{tpu_custom_call.1} parent=1 // loop_body
      %s23 = ssub.s32 %s18, 1
      %s24 = ssub.s32 %s18, 2
      %s25 = sadd.s32 %s18, 1
      %s26 = ssub.s32 %s18, %s25
      %p27 = scmp.eq.s32.totalorder %s26, 0
      %s29 = sadd.s32 %s28, 1
      %s30 = scalar_select %p27, %s28, %s29
      %p33 = pneg %p27
      %p34 = scmp.eq.s32.totalorder %s18, 1
      %p35 = por %p33, %p34
      %p36 = scmp.ne.s32.totalorder %s28, %s31
      %p37 = scmp.eq.s32.totalorder %s18, 0
      %p38 = por %p36, %p37
      %p39 = scmp.ne.s32.totalorder %s28, %s31
      %p40 = scmp.eq.s32.totalorder %s23, 1
      %p41 = por %p39, %p40
      %p42 = scmp.ne.s32.totalorder %s31, %s32
      %p43 = scmp.eq.s32.totalorder %s23, 0
      %p44 = por %p42, %p43
      %p45 = scmp.ne.s32.totalorder %s31, %s32
      %p46 = scmp.eq.s32.totalorder %s24, 1
      %p47 = por %p45, %p46
      %p49 = scmp.ne.s32.totalorder %s32, %s48
      %p50 = scmp.eq.s32.totalorder %s24, 0
      %p51 = por %p49, %p50
      %s53 = sadd.s32 %s52, 1
      %p56 = scmp.eq.s32.totalorder %s18, 1
      %p57 = scmp.ne.s32.totalorder %s52, %s54
      %p58 = scmp.eq.s32.totalorder %s18, 0
      %p59 = por %p57, %p58
      %p60 = scmp.ne.s32.totalorder %s52, %s54
      %p61 = scmp.eq.s32.totalorder %s23, 1
      %p62 = por %p60, %p61
      %p63 = scmp.ne.s32.totalorder %s54, %s55
      %p64 = scmp.eq.s32.totalorder %s23, 0
      %p65 = por %p63, %p64
      %p66 = scmp.ne.s32.totalorder %s54, %s55
      %p67 = scmp.eq.s32.totalorder %s24, 1
      %p68 = por %p66, %p67
      %p70 = scmp.ne.s32.totalorder %s55, %s69
      %p71 = scmp.eq.s32.totalorder %s24, 0
      %p72 = por %p70, %p71
      %s74 = sadd.s32 %s73, 1
      %p77 = scmp.eq.s32.totalorder %s18, 1
      %p78 = scmp.ne.s32.totalorder %s73, %s75
      %p79 = scmp.eq.s32.totalorder %s18, 0
      %p80 = por %p78, %p79
      %p81 = scmp.ne.s32.totalorder %s73, %s75
      %p82 = scmp.eq.s32.totalorder %s23, 1
      %p83 = por %p81, %p82
      %p84 = scmp.ne.s32.totalorder %s75, %s76
      %p85 = scmp.eq.s32.totalorder %s23, 0
      %p86 = por %p84, %p85
      %p87 = scmp.ne.s32.totalorder %s75, %s76
      %p88 = scmp.eq.s32.totalorder %s24, 1
      %p89 = por %p87, %p88
      %p91 = scmp.ne.s32.totalorder %s76, %s90
      %p92 = scmp.eq.s32.totalorder %s24, 0
      %p93 = por %p91, %p92
      %s95 = sadd.s32 %s94, 1
      %p98 = scmp.eq.s32.totalorder %s18, 1
      %p99 = scmp.ne.s32.totalorder %s94, %s96
      %p100 = scmp.eq.s32.totalorder %s18, 0
      %p101 = por %p99, %p100
      %p102 = scmp.ne.s32.totalorder %s94, %s96
      %p103 = scmp.eq.s32.totalorder %s23, 1
      %p104 = por %p102, %p103
      %p105 = scmp.ne.s32.totalorder %s96, %s97
      %p106 = scmp.eq.s32.totalorder %s23, 0
      %p107 = por %p105, %p106
      %p108 = scmp.ne.s32.totalorder %s96, %s97
      %p109 = scmp.eq.s32.totalorder %s24, 1
      %p110 = por %p108, %p109
      %p112 = scmp.ne.s32.totalorder %s97, %s111
      %p113 = scmp.eq.s32.totalorder %s24, 0
      %p114 = por %p112, %p113
      %s116 = sadd.s32 %s115, 1
      %p119 = scmp.eq.s32.totalorder %s18, 1
      %p120 = scmp.ne.s32.totalorder %s115, %s117
      %p121 = scmp.eq.s32.totalorder %s18, 0
      %p122 = por %p120, %p121
      %p123 = scmp.ne.s32.totalorder %s115, %s117
      %p124 = scmp.eq.s32.totalorder %s23, 1
      %p125 = por %p123, %p124
      %p126 = scmp.ne.s32.totalorder %s117, %s118
      %p127 = scmp.eq.s32.totalorder %s23, 0
      %p128 = por %p126, %p127
      %p129 = scmp.ne.s32.totalorder %s117, %s118
      %p130 = scmp.eq.s32.totalorder %s24, 1
      %p131 = por %p129, %p130
      %p133 = scmp.ne.s32.totalorder %s118, %s132
      %p134 = scmp.eq.s32.totalorder %s24, 0
      %p135 = por %p133, %p134
      %s137 = sadd.s32 %s136, 1
      %p140 = scmp.eq.s32.totalorder %s18, 1
      %p141 = scmp.ne.s32.totalorder %s136, %s138
      %p142 = scmp.eq.s32.totalorder %s18, 0
      %p143 = por %p141, %p142
      %p144 = scmp.ne.s32.totalorder %s136, %s138
      %p145 = scmp.eq.s32.totalorder %s23, 1
      %p146 = por %p144, %p145
      %p147 = scmp.ne.s32.totalorder %s138, %s139
      %p148 = scmp.eq.s32.totalorder %s23, 0
      %p149 = por %p147, %p148
      %p150 = scmp.ne.s32.totalorder %s138, %s139
      %p151 = scmp.eq.s32.totalorder %s24, 1
      %p152 = por %p150, %p151
      %p154 = scmp.ne.s32.totalorder %s139, %s153
      %p155 = scmp.eq.s32.totalorder %s24, 0
      %p156 = por %p154, %p155
      %s158 = sadd.s32 %s157, 1
      %p161 = scmp.eq.s32.totalorder %s18, 1
      %p162 = scmp.ne.s32.totalorder %s157, %s159
      %p163 = scmp.eq.s32.totalorder %s18, 0
      %p164 = por %p162, %p163
      %p165 = scmp.ne.s32.totalorder %s157, %s159
      %p166 = scmp.eq.s32.totalorder %s23, 1
      %p167 = por %p165, %p166
      %p168 = scmp.ne.s32.totalorder %s159, %s160
      %p169 = scmp.eq.s32.totalorder %s23, 0
      %p170 = por %p168, %p169
      %p171 = scmp.ne.s32.totalorder %s159, %s160
      %p172 = scmp.eq.s32.totalorder %s24, 1
      %p173 = por %p171, %p172
      %p175 = scmp.ne.s32.totalorder %s160, %s174
      %p176 = scmp.eq.s32.totalorder %s24, 0
      %p177 = por %p175, %p176
      %s179 = sadd.s32 %s178, 1
      %p182 = scmp.eq.s32.totalorder %s18, 1
      %p183 = scmp.ne.s32.totalorder %s178, %s180
      %p184 = scmp.eq.s32.totalorder %s18, 0
      %p185 = por %p183, %p184
      %p186 = scmp.ne.s32.totalorder %s178, %s180
      %p187 = scmp.eq.s32.totalorder %s23, 1
      %p188 = por %p186, %p187
      %p189 = scmp.ne.s32.totalorder %s180, %s181
      %p190 = scmp.eq.s32.totalorder %s23, 0
      %p191 = por %p189, %p190
      %p192 = scmp.ne.s32.totalorder %s180, %s181
      %p193 = scmp.eq.s32.totalorder %s24, 1
      %p194 = por %p192, %p193
      %p196 = scmp.ne.s32.totalorder %s181, %s195
      %p197 = scmp.eq.s32.totalorder %s24, 0
      %p198 = por %p196, %p197
      %s200 = sadd.s32 %s199, 1
      %p203 = scmp.eq.s32.totalorder %s18, 1
      %p204 = scmp.ne.s32.totalorder %s199, %s201
      %p205 = scmp.eq.s32.totalorder %s18, 0
      %p206 = por %p204, %p205
      %p207 = scmp.ne.s32.totalorder %s199, %s201
      %p208 = scmp.eq.s32.totalorder %s23, 1
      %p209 = por %p207, %p208
      %p210 = scmp.ne.s32.totalorder %s201, %s202
      %p211 = scmp.eq.s32.totalorder %s23, 0
      %p212 = por %p210, %p211
      %p213 = scmp.ne.s32.totalorder %s201, %s202
      %p214 = scmp.eq.s32.totalorder %s24, 1
      %p215 = por %p213, %p214
      %p217 = scmp.ne.s32.totalorder %s202, %s216
      %p218 = scmp.eq.s32.totalorder %s24, 0
      %p219 = por %p217, %p218
      %s220 = ssub.s32 %s18, %s25
      %p221 = scmp.eq.s32.totalorder %s220, 0
      %s223 = sadd.s32 %s222, 1
      %s224 = scalar_select %p221, %s222, %s223
      %p227 = pneg %p221
      %p228 = scmp.eq.s32.totalorder %s18, 1
      %p229 = por %p227, %p228
      %p230 = scmp.ne.s32.totalorder %s222, %s225
      %p231 = scmp.eq.s32.totalorder %s18, 0
      %p232 = por %p230, %p231
      %p233 = scmp.ne.s32.totalorder %s222, %s225
      %p234 = scmp.eq.s32.totalorder %s23, 1
      %p235 = por %p233, %p234
      %p236 = scmp.ne.s32.totalorder %s225, %s226
      %p237 = scmp.eq.s32.totalorder %s23, 0
      %p238 = por %p236, %p237
      %p239 = scmp.ne.s32.totalorder %s225, %s226
      %p240 = scmp.eq.s32.totalorder %s24, 1
      %p241 = por %p239, %p240
      %p243 = scmp.ne.s32.totalorder %s226, %s242
      %p244 = scmp.eq.s32.totalorder %s24, 0
      %p245 = por %p243, %p244
      %p246 = scmp.le.s32.totalorder 1, %s18
      %p247 = scmp.lt.s32.totalorder %s18, 3
      %p248 = pnand %p246, %p247
      %p249 = pneg %p248
      // Predicated region
      $region9: #{tpu_custom_call.1} parent=5 // pred_check
        _
      $region10: #{tpu_custom_call.1} parent=5 // pred_check_branch
        %251 = sbr.rel (%p248) target = $region12
      $region11: #{tpu_custom_call.1} parent=5 // pred_region
        %s252 = ssub.s32 %s18, 1
        // Predicated region
        $region13: #{tpu_custom_call.1} parent=11 // pred_check
          %p253 = pneg %p65
        $region14: #{tpu_custom_call.1} parent=11 // pred_check_branch
          %255 = sbr.rel (%p253) target = $region16
        $region15: #{tpu_custom_call.1} parent=11 // pred_region
          _
        $region16: #{tpu_custom_call.1} parent=11 // pred_fallthru
          _
        // Predicated region
        $region17: #{tpu_custom_call.1} parent=11 // pred_check
          %p256 = pneg %p86
        $region18: #{tpu_custom_call.1} parent=11 // pred_check_branch
          %258 = sbr.rel (%p256) target = $region20
        $region19: #{tpu_custom_call.1} parent=11 // pred_region
          _
        $region20: #{tpu_custom_call.1} parent=11 // pred_fallthru
          _
        // Predicated region
        $region21: #{tpu_custom_call.1} parent=11 // pred_check
          %p259 = pneg %p107
        $region22: #{tpu_custom_call.1} parent=11 // pred_check_branch
          %261 = sbr.rel (%p259) target = $region24
        $region23: #{tpu_custom_call.1} parent=11 // pred_region
          _
        $region24: #{tpu_custom_call.1} parent=11 // pred_fallthru
          _
        // Predicated region
        $region25: #{tpu_custom_call.1} parent=11 // pred_check
          %p262 = pneg %p128
        $region26: #{tpu_custom_call.1} parent=11 // pred_check_branch
          %264 = sbr.rel (%p262) target = $region28
        $region27: #{tpu_custom_call.1} parent=11 // pred_region
          _
        $region28: #{tpu_custom_call.1} parent=11 // pred_fallthru
          _
        // Predicated region
        $region29: #{tpu_custom_call.1} parent=11 // pred_check
          %p265 = pneg %p149
        $region30: #{tpu_custom_call.1} parent=11 // pred_check_branch
          %267 = sbr.rel (%p265) target = $region32
        $region31: #{tpu_custom_call.1} parent=11 // pred_region
          _
        $region32: #{tpu_custom_call.1} parent=11 // pred_fallthru
          _
        // Predicated region
        $region33: #{tpu_custom_call.1} parent=11 // pred_check
          %p268 = pneg %p170
        $region34: #{tpu_custom_call.1} parent=11 // pred_check_branch
          %270 = sbr.rel (%p268) target = $region36
        $region35: #{tpu_custom_call.1} parent=11 // pred_region
          _
        $region36: #{tpu_custom_call.1} parent=11 // pred_fallthru
          _
        // Predicated region
        $region37: #{tpu_custom_call.1} parent=11 // pred_check
          %p271 = pneg %p191
        $region38: #{tpu_custom_call.1} parent=11 // pred_check_branch
          %273 = sbr.rel (%p271) target = $region40
        $region39: #{tpu_custom_call.1} parent=11 // pred_region
          _
        $region40: #{tpu_custom_call.1} parent=11 // pred_fallthru
          _
        // Predicated region
        $region41: #{tpu_custom_call.1} parent=11 // pred_check
          %p274 = pneg %p212
        $region42: #{tpu_custom_call.1} parent=11 // pred_check_branch
          %276 = sbr.rel (%p274) target = $region44
        $region43: #{tpu_custom_call.1} parent=11 // pred_region
          _
        $region44: #{tpu_custom_call.1} parent=11 // pred_fallthru
          _
      $region12: #{tpu_custom_call.1} parent=5 // pred_fallthru
        _
      %p277 = scmp.lt.s32.totalorder %s18, 2
      // Predicated region
      $region45: #{tpu_custom_call.1} parent=5 // pred_check
        %p278 = pneg %p277
      $region46: #{tpu_custom_call.1} parent=5 // pred_check_branch
        %280 = sbr.rel (%p278) target = $region48
      $region47: #{tpu_custom_call.1} parent=5 // pred_region
        // Predicated region
        $region49: #{tpu_custom_call.1} parent=47 // pred_check
          %p281 = pneg %p38
        $region50: #{tpu_custom_call.1} parent=47 // pred_check_branch
          %283 = sbr.rel (%p281) target = $region52
        $region51: #{tpu_custom_call.1} parent=47 // pred_region
          %p284 = scmp.lt.s32.totalorder %s18, 1
          %s285 = scalar_select %p284, %s18, 1
          %s286 = smul.addr %s285, 2
          %s287 = smul.addr %s286, 8
          %s288 = scalar_lea.vmem %s0, %s287
        $region52: #{tpu_custom_call.1} parent=47 // pred_fallthru
          _
      $region48: #{tpu_custom_call.1} parent=5 // pred_fallthru
        _
      %p289 = scmp.le.s32.totalorder 1, %s18
      %p290 = scmp.lt.s32.totalorder %s18, 3
      %p291 = pnand %p289, %p290
      %p292 = pneg %p291
      // Predicated region
      $region53: #{tpu_custom_call.1} parent=5 // pred_check
        _
      $region54: #{tpu_custom_call.1} parent=5 // pred_check_branch
        %294 = sbr.rel (%p291) target = $region56
      $region55: #{tpu_custom_call.1} parent=5 // pred_region
        %s295 = ssub.s32 %s18, 1
        %p296 = scmp.lt.s32.totalorder %s23, 1
        %s297 = scalar_select %p296, %s23, 1
        %s298 = smul.addr %s297, 2
        %s299 = smul.addr %s298, 8
        %s300 = scalar_lea.vmem %s0, %s299
        %p301 = pneg %p44
        %p302 = pneg %p41
        %p303 = pneg %p65
        %p304 = pneg %p62
        %p305 = pneg %p86
        %p306 = pneg %p83
        %p307 = pneg %p107
        %p308 = pneg %p104
        %p309 = pneg %p128
        %p310 = pneg %p125
        %p311 = pneg %p149
        %p312 = pneg %p146
        %p313 = pneg %p170
        %p314 = pneg %p167
        %p315 = pneg %p191
        %p316 = pneg %p188
        %p317 = pneg %p212
        %p318 = pneg %p209
        %p319 = pneg %p238
        %p320 = pneg %p235
        %s321 = sand.u32 %s225, 1
        %s322 = scalar_lea.sflag [#allocation3], %s321
        %s323 = sand.u32 %s225, 1
        %s324 = smul.addr %s323, 16
        %s325 = scalar_lea.vmem [#allocation2], %s324
        %p326 = scmp.lt.s32.totalorder %s23, 1
        %s327 = scalar_select %p326, %s23, 1
        %s328 = smul.addr %s327, 2
        %s329 = smul.addr %s328, 8
        %s330 = scalar_lea.vmem %s0, %s329
        %v331 = vld [vmem:[%s330] sm:$0xff]
        %v332 = vld [vmem:[%s330 + $0x8] sm:$0xff]
        %v333 = vld [vmem:[%s2] sm:$0xff]
        %v334 = vld [vmem:[%s2 + $0x8] sm:$0xff]
        %v335 = vld [vmem:[%s2 + $0x10] sm:$0xff]
        %v336 = vld [vmem:[%s2 + $0x18] sm:$0xff]
        %v337 = vld [vmem:[%s2 + $0x20] sm:$0xff]
        %v338 = vld [vmem:[%s2 + $0x28] sm:$0xff]
        %v339 = vld [vmem:[%s1] sm:$0xff]
        %v340 = vld [vmem:[%s1 + $0x8] sm:$0xff]
        %v341 = vld [vmem:[%s1 + $0x10] sm:$0xff]
        %v342 = vld [vmem:[%s1 + $0x18] sm:$0xff]
        %v343 = vld [vmem:[%s1 + $0x20] sm:$0xff]
        %v344 = vld [vmem:[%s1 + $0x28] sm:$0xff]
        %346 = vset.pattern.permute.xlu0 0
        %347 = vperm.xlu0 %346, %v333
        %v348 = vpop.permute.xlu0 %347
        %351 = vset.pattern.permute.xlu0 0
        %352 = vperm.xlu0 %351, %v334
        %v353 = vpop.permute.xlu0 %352
        %356 = vset.pattern.permute.xlu0 0
        %357 = vperm.xlu0 %356, %v335
        %v358 = vpop.permute.xlu0 %357
        %361 = vset.pattern.permute.xlu0 0
        %362 = vperm.xlu0 %361, %v336
        %v363 = vpop.permute.xlu0 %362
        %366 = vset.pattern.permute.xlu0 0
        %367 = vperm.xlu0 %366, %v337
        %v368 = vpop.permute.xlu0 %367
        %371 = vset.pattern.permute.xlu0 0
        %372 = vperm.xlu0 %371, %v338
        %v373 = vpop.permute.xlu0 %372
        %vm375 = vcmask 64512
        %v377 = vsel %vm375, %v339, 0
        %v380 = vsel %vm375, %v340, 0
        %v383 = vsel %vm375, %v341, 0
        %v386 = vsel %vm375, %v342, 0
        %v389 = vsel %vm375, %v343, 0
        %v392 = vsel %vm375, %v344, 0
        %394 = vmatpush.msra.mxu0 0.0
        %395 = vmatpush.msra.mxu0 0.0
        %396 = vmatpush.msra.mxu0 0.0
        %397 = vmatpush.msra.mxu0 0.0
        %398 = vmatpush.msra.mxu0 0.0
        %399 = vmatpush.msra.mxu0 0.0
        %400 = vmatpush.msra.mxu0 0.0
        %401 = vmatpush.msra.mxu0 0.0
        %402 = vmatpush.msra.mxu0 0.0
        %403 = vmatpush.msra.mxu0 0.0
        %404 = vmatpush.msra.mxu0 0.0
        %405 = vmatpush.msra.mxu0 0.0
        %406 = vmatpush.msra.mxu0 0.0
        %407 = vmatpush.msra.mxu0 0.0
        %408 = vmatpush.msra.mxu0 0.0
        %409 = vmatpush.msra.mxu0 %v331
        %410 = vmatmul.f32.gmra.mxu0 %v377
        %v411 = vpop.f32.mrf.mxu0
        %v412 = vadd.f32 %v348, %v411
        %413 = vmatmul.f32.gmra.mxu0 %v380
        %v414 = vpop.f32.mrf.mxu0
        %v415 = vadd.f32 %v353, %v414
        %416 = vmatmul.f32.gmra.mxu0 %v383
        %v417 = vpop.f32.mrf.mxu0
        %v418 = vadd.f32 %v358, %v417
        %419 = vmatmul.f32.gmra.mxu0 %v386
        %v420 = vpop.f32.mrf.mxu0
        %v421 = vadd.f32 %v363, %v420
        %422 = vmatmul.f32.gmra.mxu0 %v389
        %v423 = vpop.f32.mrf.mxu0
        %v424 = vadd.f32 %v368, %v423
        %425 = vmatmul.f32.gmra.mxu0 %v392
        %v426 = vpop.f32.mrf.mxu0
        %v427 = vadd.f32 %v373, %v426
        %428 = vdwg.mxu0
        %429 = vmatpush.msra.mxu0 0.0
        %430 = vmatpush.msra.mxu0 0.0
        %431 = vmatpush.msra.mxu0 0.0
        %432 = vmatpush.msra.mxu0 0.0
        %433 = vmatpush.msra.mxu0 0.0
        %434 = vmatpush.msra.mxu0 0.0
        %435 = vmatpush.msra.mxu0 0.0
        %436 = vmatpush.msra.mxu0 0.0
        %437 = vmatpush.msra.mxu0 0.0
        %438 = vmatpush.msra.mxu0 0.0
        %439 = vmatpush.msra.mxu0 0.0
        %440 = vmatpush.msra.mxu0 0.0
        %441 = vmatpush.msra.mxu0 0.0
        %442 = vmatpush.msra.mxu0 0.0
        %443 = vmatpush.msra.mxu0 0.0
        %444 = vmatpush.msra.mxu0 %v332
        %445 = vmatmul.f32.gmra.mxu0 %v377
        %v446 = vpop.f32.mrf.mxu0
        %v447 = vadd.f32 %v348, %v446
        %448 = vmatmul.f32.gmra.mxu0 %v380
        %v449 = vpop.f32.mrf.mxu0
        %v450 = vadd.f32 %v353, %v449
        %451 = vmatmul.f32.gmra.mxu0 %v383
        %v452 = vpop.f32.mrf.mxu0
        %v453 = vadd.f32 %v358, %v452
        %454 = vmatmul.f32.gmra.mxu0 %v386
        %v455 = vpop.f32.mrf.mxu0
        %v456 = vadd.f32 %v363, %v455
        %457 = vmatmul.f32.gmra.mxu0 %v389
        %v458 = vpop.f32.mrf.mxu0
        %v459 = vadd.f32 %v368, %v458
        %460 = vmatmul.f32.gmra.mxu0 %v392
        %v461 = vpop.f32.mrf.mxu0
        %v462 = vadd.f32 %v373, %v461
        %463 = vdwg.mxu0
        %v464 = vmax.f32 %v412, 0.0
        %v465 = vmax.f32 %v447, 0.0
        %v466 = vmax.f32 %v415, 0.0
        %v467 = vmax.f32 %v450, 0.0
        %v468 = vmax.f32 %v418, 0.0
        %v469 = vmax.f32 %v453, 0.0
        %v470 = vmax.f32 %v421, 0.0
        %v471 = vmax.f32 %v456, 0.0
        %v472 = vmax.f32 %v424, 0.0
        %v473 = vmax.f32 %v459, 0.0
        %v474 = vmax.f32 %v427, 0.0
        %v475 = vmax.f32 %v462, 0.0
        %v476 = vlaneseq
        %v477 = vand.u32 %v476, 127
        %v478 = vadd.s32 %v477, 128
        %v479 = vand.u32 %v477, 15
        %v480 = vand.u32 %v478, 15
        %vm481 = vcmp.ge.s32.totalorder %v477, 16
        %vm482 = vcmp.ge.s32.totalorder %v478, 16
        %vm483 = vcmp.lt.s32.totalorder %v477, 240
        %vm484 = vcmp.lt.s32.totalorder %v478, 240
        %vm485 = vcmp.ge.s32.totalorder %v479, 1
        %vm486 = vcmp.ge.s32.totalorder %v480, 1
        %vm487 = vcmp.lt.s32.totalorder %v479, 15
        %vm488 = vcmp.lt.s32.totalorder %v480, 15
        %489 = vset.pattern.permute.xlu0 6
        %490 = vperm.xlu0 %489, %v333
        %v491 = vpop.permute.xlu0 %490
        %493 = vset.pattern.permute.xlu0 6
        %494 = vperm.xlu0 %493, %v334
        %v495 = vpop.permute.xlu0 %494
        %497 = vset.pattern.permute.xlu0 6
        %498 = vperm.xlu0 %497, %v335
        %v499 = vpop.permute.xlu0 %498
        %501 = vset.pattern.permute.xlu0 6
        %502 = vperm.xlu0 %501, %v336
        %v503 = vpop.permute.xlu0 %502
        %505 = vset.pattern.permute.xlu0 6
        %506 = vperm.xlu0 %505, %v337
        %v507 = vpop.permute.xlu0 %506
        %509 = vset.pattern.permute.xlu0 6
        %510 = vperm.xlu0 %509, %v338
        %v511 = vpop.permute.xlu0 %510
        %v513 = vmul.f32 %v464, %v491
        %v514 = vmul.f32 %v465, %v491
        %v515 = vmul.f32 %v466, %v495
        %v516 = vmul.f32 %v467, %v495
        %v517 = vmul.f32 %v468, %v499
        %v518 = vmul.f32 %v469, %v499
        %v519 = vmul.f32 %v470, %v503
        %v520 = vmul.f32 %v471, %v503
        %v521 = vmul.f32 %v472, %v507
        %v522 = vmul.f32 %v473, %v507
        %v523 = vmul.f32 %v474, %v511
        %v524 = vmul.f32 %v475, %v511
        %525 = vrot.lane.b32.xlu0 %v464, 17
        %v526 = vpop.permute.xlu0 %525
        %527 = vrot.lane.b32.xlu0 %v466, 17
        %v528 = vpop.permute.xlu0 %527
        %529 = vrot.lane.b32.xlu0 %v468, 17
        %v530 = vpop.permute.xlu0 %529
        %531 = vrot.lane.b32.xlu0 %v470, 17
        %v532 = vpop.permute.xlu0 %531
        %533 = vrot.lane.b32.xlu0 %v472, 17
        %v534 = vpop.permute.xlu0 %533
        %535 = vrot.lane.b32.xlu0 %v474, 17
        %v536 = vpop.permute.xlu0 %535
        %537 = vrot.lane.b32.xlu0 %v465, 17
        %v538 = vpop.permute.xlu0 %537
        %539 = vrot.lane.b32.xlu0 %v467, 17
        %v540 = vpop.permute.xlu0 %539
        %541 = vrot.lane.b32.xlu0 %v469, 17
        %v542 = vpop.permute.xlu0 %541
        %543 = vrot.lane.b32.xlu0 %v471, 17
        %v544 = vpop.permute.xlu0 %543
        %545 = vrot.lane.b32.xlu0 %v473, 17
        %v546 = vpop.permute.xlu0 %545
        %547 = vrot.lane.b32.xlu0 %v475, 17
        %v548 = vpop.permute.xlu0 %547
        %vm549 = vcmp.lt.s32.totalorder %v477, 17
        %v550 = vsel %vm549, %v526, %v538
        %v551 = vsel %vm549, %v528, %v540
        %v552 = vsel %vm549, %v530, %v542
        %v553 = vsel %vm549, %v532, %v544
        %v554 = vsel %vm549, %v534, %v546
        %v555 = vsel %vm549, %v536, %v548
        %v556 = vsel %vm549, %v538, %v526
        %v557 = vsel %vm549, %v540, %v528
        %v558 = vsel %vm549, %v542, %v530
        %v559 = vsel %vm549, %v544, %v532
        %v560 = vsel %vm549, %v546, %v534
        %v561 = vsel %vm549, %v548, %v536
        %vm562 = vmand %vm481, %vm485
        %vm563 = vmand %vm482, %vm486
        %v564 = vsel %vm562, 1, 0
        %v565 = vsel %vm563, 1, 0
        %vm566 = vcmp.eq.s32.totalorder %v564, 1
        %vm567 = vcmp.eq.s32.totalorder %v565, 1
        %v568 = vsel %vm566, %v556, 0.0
        %v569 = vsel %vm567, %v550, 0.0
        %v570 = vsel %vm566, %v557, 0.0
        %v571 = vsel %vm567, %v551, 0.0
        %v572 = vsel %vm566, %v558, 0.0
        %v573 = vsel %vm567, %v552, 0.0
        %v574 = vsel %vm566, %v559, 0.0
        %v575 = vsel %vm567, %v553, 0.0
        %v576 = vsel %vm566, %v560, 0.0
        %v577 = vsel %vm567, %v554, 0.0
        %v578 = vsel %vm566, %v561, 0.0
        %v579 = vsel %vm567, %v555, 0.0
        %580 = vset.pattern.permute.xlu0 2
        %581 = vperm.xlu0 %580, %v333
        %v582 = vpop.permute.xlu0 %581
        %584 = vset.pattern.permute.xlu0 2
        %585 = vperm.xlu0 %584, %v334
        %v586 = vpop.permute.xlu0 %585
        %588 = vset.pattern.permute.xlu0 2
        %589 = vperm.xlu0 %588, %v335
        %v590 = vpop.permute.xlu0 %589
        %592 = vset.pattern.permute.xlu0 2
        %593 = vperm.xlu0 %592, %v336
        %v594 = vpop.permute.xlu0 %593
        %596 = vset.pattern.permute.xlu0 2
        %597 = vperm.xlu0 %596, %v337
        %v598 = vpop.permute.xlu0 %597
        %600 = vset.pattern.permute.xlu0 2
        %601 = vperm.xlu0 %600, %v338
        %v602 = vpop.permute.xlu0 %601
        %v604 = vmul.f32 %v568, %v582
        %v605 = vmul.f32 %v569, %v582
        %v606 = vmul.f32 %v570, %v586
        %v607 = vmul.f32 %v571, %v586
        %v608 = vmul.f32 %v572, %v590
        %v609 = vmul.f32 %v573, %v590
        %v610 = vmul.f32 %v574, %v594
        %v611 = vmul.f32 %v575, %v594
        %v612 = vmul.f32 %v576, %v598
        %v613 = vmul.f32 %v577, %v598
        %v614 = vmul.f32 %v578, %v602
        %v615 = vmul.f32 %v579, %v602
        %v616 = vadd.f32 %v513, %v604
        %v617 = vadd.f32 %v514, %v605
        %v618 = vadd.f32 %v515, %v606
        %v619 = vadd.f32 %v516, %v607
        %v620 = vadd.f32 %v517, %v608
        %v621 = vadd.f32 %v518, %v609
        %v622 = vadd.f32 %v519, %v610
        %v623 = vadd.f32 %v520, %v611
        %v624 = vadd.f32 %v521, %v612
        %v625 = vadd.f32 %v522, %v613
        %v626 = vadd.f32 %v523, %v614
        %v627 = vadd.f32 %v524, %v615
        %628 = vrot.lane.b32.xlu0 %v464, 16
        %v629 = vpop.permute.xlu0 %628
        %630 = vrot.lane.b32.xlu0 %v466, 16
        %v631 = vpop.permute.xlu0 %630
        %632 = vrot.lane.b32.xlu0 %v468, 16
        %v633 = vpop.permute.xlu0 %632
        %634 = vrot.lane.b32.xlu0 %v470, 16
        %v635 = vpop.permute.xlu0 %634
        %636 = vrot.lane.b32.xlu0 %v472, 16
        %v637 = vpop.permute.xlu0 %636
        %638 = vrot.lane.b32.xlu0 %v474, 16
        %v639 = vpop.permute.xlu0 %638
        %640 = vrot.lane.b32.xlu0 %v465, 16
        %v641 = vpop.permute.xlu0 %640
        %642 = vrot.lane.b32.xlu0 %v467, 16
        %v643 = vpop.permute.xlu0 %642
        %644 = vrot.lane.b32.xlu0 %v469, 16
        %v645 = vpop.permute.xlu0 %644
        %646 = vrot.lane.b32.xlu0 %v471, 16
        %v647 = vpop.permute.xlu0 %646
        %648 = vrot.lane.b32.xlu0 %v473, 16
        %v649 = vpop.permute.xlu0 %648
        %650 = vrot.lane.b32.xlu0 %v475, 16
        %v651 = vpop.permute.xlu0 %650
        %vm652 = vcmp.lt.s32.totalorder %v477, 16
        %v653 = vsel %vm652, %v629, %v641
        %v654 = vsel %vm652, %v631, %v643
        %v655 = vsel %vm652, %v633, %v645
        %v656 = vsel %vm652, %v635, %v647
        %v657 = vsel %vm652, %v637, %v649
        %v658 = vsel %vm652, %v639, %v651
        %v659 = vsel %vm652, %v641, %v629
        %v660 = vsel %vm652, %v643, %v631
        %v661 = vsel %vm652, %v645, %v633
        %v662 = vsel %vm652, %v647, %v635
        %v663 = vsel %vm652, %v649, %v637
        %v664 = vsel %vm652, %v651, %v639
        %v665 = vsel %vm481, 1, 0
        %v666 = vsel %vm482, 1, 0
        %vm667 = vcmp.eq.s32.totalorder %v665, 1
        %vm668 = vcmp.eq.s32.totalorder %v666, 1
        %v669 = vsel %vm667, %v659, 0.0
        %v670 = vsel %vm668, %v653, 0.0
        %v671 = vsel %vm667, %v660, 0.0
        %v672 = vsel %vm668, %v654, 0.0
        %v673 = vsel %vm667, %v661, 0.0
        %v674 = vsel %vm668, %v655, 0.0
        %v675 = vsel %vm667, %v662, 0.0
        %v676 = vsel %vm668, %v656, 0.0
        %v677 = vsel %vm667, %v663, 0.0
        %v678 = vsel %vm668, %v657, 0.0
        %v679 = vsel %vm667, %v664, 0.0
        %v680 = vsel %vm668, %v658, 0.0
        %681 = vset.pattern.permute.xlu0 3
        %682 = vperm.xlu0 %681, %v333
        %v683 = vpop.permute.xlu0 %682
        %685 = vset.pattern.permute.xlu0 3
        %686 = vperm.xlu0 %685, %v334
        %v687 = vpop.permute.xlu0 %686
        %689 = vset.pattern.permute.xlu0 3
        %690 = vperm.xlu0 %689, %v335
        %v691 = vpop.permute.xlu0 %690
        %693 = vset.pattern.permute.xlu0 3
        %694 = vperm.xlu0 %693, %v336
        %v695 = vpop.permute.xlu0 %694
        %697 = vset.pattern.permute.xlu0 3
        %698 = vperm.xlu0 %697, %v337
        %v699 = vpop.permute.xlu0 %698
        %701 = vset.pattern.permute.xlu0 3
        %702 = vperm.xlu0 %701, %v338
        %v703 = vpop.permute.xlu0 %702
        %v705 = vmul.f32 %v669, %v683
        %v706 = vmul.f32 %v670, %v683
        %v707 = vmul.f32 %v671, %v687
        %v708 = vmul.f32 %v672, %v687
        %v709 = vmul.f32 %v673, %v691
        %v710 = vmul.f32 %v674, %v691
        %v711 = vmul.f32 %v675, %v695
        %v712 = vmul.f32 %v676, %v695
        %v713 = vmul.f32 %v677, %v699
        %v714 = vmul.f32 %v678, %v699
        %v715 = vmul.f32 %v679, %v703
        %v716 = vmul.f32 %v680, %v703
        %v717 = vadd.f32 %v616, %v705
        %v718 = vadd.f32 %v617, %v706
        %v719 = vadd.f32 %v618, %v707
        %v720 = vadd.f32 %v619, %v708
        %v721 = vadd.f32 %v620, %v709
        %v722 = vadd.f32 %v621, %v710
        %v723 = vadd.f32 %v622, %v711
        %v724 = vadd.f32 %v623, %v712
        %v725 = vadd.f32 %v624, %v713
        %v726 = vadd.f32 %v625, %v714
        %v727 = vadd.f32 %v626, %v715
        %v728 = vadd.f32 %v627, %v716
        %729 = vrot.lane.b32.xlu0 %v464, 15
        %v730 = vpop.permute.xlu0 %729
        %731 = vrot.lane.b32.xlu0 %v466, 15
        %v732 = vpop.permute.xlu0 %731
        %733 = vrot.lane.b32.xlu0 %v468, 15
        %v734 = vpop.permute.xlu0 %733
        %735 = vrot.lane.b32.xlu0 %v470, 15
        %v736 = vpop.permute.xlu0 %735
        %737 = vrot.lane.b32.xlu0 %v472, 15
        %v738 = vpop.permute.xlu0 %737
        %739 = vrot.lane.b32.xlu0 %v474, 15
        %v740 = vpop.permute.xlu0 %739
        %741 = vrot.lane.b32.xlu0 %v465, 15
        %v742 = vpop.permute.xlu0 %741
        %743 = vrot.lane.b32.xlu0 %v467, 15
        %v744 = vpop.permute.xlu0 %743
        %745 = vrot.lane.b32.xlu0 %v469, 15
        %v746 = vpop.permute.xlu0 %745
        %747 = vrot.lane.b32.xlu0 %v471, 15
        %v748 = vpop.permute.xlu0 %747
        %749 = vrot.lane.b32.xlu0 %v473, 15
        %v750 = vpop.permute.xlu0 %749
        %751 = vrot.lane.b32.xlu0 %v475, 15
        %v752 = vpop.permute.xlu0 %751
        %vm753 = vcmp.lt.s32.totalorder %v477, 15
        %v754 = vsel %vm753, %v730, %v742
        %v755 = vsel %vm753, %v732, %v744
        %v756 = vsel %vm753, %v734, %v746
        %v757 = vsel %vm753, %v736, %v748
        %v758 = vsel %vm753, %v738, %v750
        %v759 = vsel %vm753, %v740, %v752
        %v760 = vsel %vm753, %v742, %v730
        %v761 = vsel %vm753, %v744, %v732
        %v762 = vsel %vm753, %v746, %v734
        %v763 = vsel %vm753, %v748, %v736
        %v764 = vsel %vm753, %v750, %v738
        %v765 = vsel %vm753, %v752, %v740
        %vm766 = vmand %vm481, %vm487
        %vm767 = vmand %vm482, %vm488
        %v768 = vsel %vm766, 1, 0
        %v769 = vsel %vm767, 1, 0
        %vm770 = vcmp.eq.s32.totalorder %v768, 1
        %vm771 = vcmp.eq.s32.totalorder %v769, 1
        %v772 = vsel %vm770, %v760, 0.0
        %v773 = vsel %vm771, %v754, 0.0
        %v774 = vsel %vm770, %v761, 0.0
        %v775 = vsel %vm771, %v755, 0.0
        %v776 = vsel %vm770, %v762, 0.0
        %v777 = vsel %vm771, %v756, 0.0
        %v778 = vsel %vm770, %v763, 0.0
        %v779 = vsel %vm771, %v757, 0.0
        %v780 = vsel %vm770, %v764, 0.0
        %v781 = vsel %vm771, %v758, 0.0
        %v782 = vsel %vm770, %v765, 0.0
        %v783 = vsel %vm771, %v759, 0.0
        %784 = vset.pattern.permute.xlu0 4
        %785 = vperm.xlu0 %784, %v333
        %v786 = vpop.permute.xlu0 %785
        %788 = vset.pattern.permute.xlu0 4
        %789 = vperm.xlu0 %788, %v334
        %v790 = vpop.permute.xlu0 %789
        %792 = vset.pattern.permute.xlu0 4
        %793 = vperm.xlu0 %792, %v335
        %v794 = vpop.permute.xlu0 %793
        %796 = vset.pattern.permute.xlu0 4
        %797 = vperm.xlu0 %796, %v336
        %v798 = vpop.permute.xlu0 %797
        %800 = vset.pattern.permute.xlu0 4
        %801 = vperm.xlu0 %800, %v337
        %v802 = vpop.permute.xlu0 %801
        %804 = vset.pattern.permute.xlu0 4
        %805 = vperm.xlu0 %804, %v338
        %v806 = vpop.permute.xlu0 %805
        %v808 = vmul.f32 %v772, %v786
        %v809 = vmul.f32 %v773, %v786
        %v810 = vmul.f32 %v774, %v790
        %v811 = vmul.f32 %v775, %v790
        %v812 = vmul.f32 %v776, %v794
        %v813 = vmul.f32 %v777, %v794
        %v814 = vmul.f32 %v778, %v798
        %v815 = vmul.f32 %v779, %v798
        %v816 = vmul.f32 %v780, %v802
        %v817 = vmul.f32 %v781, %v802
        %v818 = vmul.f32 %v782, %v806
        %v819 = vmul.f32 %v783, %v806
        %v820 = vadd.f32 %v717, %v808
        %v821 = vadd.f32 %v718, %v809
        %v822 = vadd.f32 %v719, %v810
        %v823 = vadd.f32 %v720, %v811
        %v824 = vadd.f32 %v721, %v812
        %v825 = vadd.f32 %v722, %v813
        %v826 = vadd.f32 %v723, %v814
        %v827 = vadd.f32 %v724, %v815
        %v828 = vadd.f32 %v725, %v816
        %v829 = vadd.f32 %v726, %v817
        %v830 = vadd.f32 %v727, %v818
        %v831 = vadd.f32 %v728, %v819
        %832 = vrot.lane.b32.xlu0 %v464, 1
        %v833 = vpop.permute.xlu0 %832
        %834 = vrot.lane.b32.xlu0 %v466, 1
        %v835 = vpop.permute.xlu0 %834
        %836 = vrot.lane.b32.xlu0 %v468, 1
        %v837 = vpop.permute.xlu0 %836
        %838 = vrot.lane.b32.xlu0 %v470, 1
        %v839 = vpop.permute.xlu0 %838
        %840 = vrot.lane.b32.xlu0 %v472, 1
        %v841 = vpop.permute.xlu0 %840
        %842 = vrot.lane.b32.xlu0 %v474, 1
        %v843 = vpop.permute.xlu0 %842
        %844 = vrot.lane.b32.xlu0 %v465, 1
        %v845 = vpop.permute.xlu0 %844
        %846 = vrot.lane.b32.xlu0 %v467, 1
        %v847 = vpop.permute.xlu0 %846
        %848 = vrot.lane.b32.xlu0 %v469, 1
        %v849 = vpop.permute.xlu0 %848
        %850 = vrot.lane.b32.xlu0 %v471, 1
        %v851 = vpop.permute.xlu0 %850
        %852 = vrot.lane.b32.xlu0 %v473, 1
        %v853 = vpop.permute.xlu0 %852
        %854 = vrot.lane.b32.xlu0 %v475, 1
        %v855 = vpop.permute.xlu0 %854
        %vm856 = vcmp.lt.s32.totalorder %v477, 1
        %v857 = vsel %vm856, %v833, %v845
        %v858 = vsel %vm856, %v835, %v847
        %v859 = vsel %vm856, %v837, %v849
        %v860 = vsel %vm856, %v839, %v851
        %v861 = vsel %vm856, %v841, %v853
        %v862 = vsel %vm856, %v843, %v855
        %v863 = vsel %vm856, %v845, %v833
        %v864 = vsel %vm856, %v847, %v835
        %v865 = vsel %vm856, %v849, %v837
        %v866 = vsel %vm856, %v851, %v839
        %v867 = vsel %vm856, %v853, %v841
        %v868 = vsel %vm856, %v855, %v843
        %v869 = vsel %vm485, 1, 0
        %v870 = vsel %vm486, 1, 0
        %vm871 = vcmp.eq.s32.totalorder %v869, 1
        %vm872 = vcmp.eq.s32.totalorder %v870, 1
        %v873 = vsel %vm871, %v863, 0.0
        %v874 = vsel %vm872, %v857, 0.0
        %v875 = vsel %vm871, %v864, 0.0
        %v876 = vsel %vm872, %v858, 0.0
        %v877 = vsel %vm871, %v865, 0.0
        %v878 = vsel %vm872, %v859, 0.0
        %v879 = vsel %vm871, %v866, 0.0
        %v880 = vsel %vm872, %v860, 0.0
        %v881 = vsel %vm871, %v867, 0.0
        %v882 = vsel %vm872, %v861, 0.0
        %v883 = vsel %vm871, %v868, 0.0
        %v884 = vsel %vm872, %v862, 0.0
        %885 = vset.pattern.permute.xlu0 5
        %886 = vperm.xlu0 %885, %v333
        %v887 = vpop.permute.xlu0 %886
        %889 = vset.pattern.permute.xlu0 5
        %890 = vperm.xlu0 %889, %v334
        %v891 = vpop.permute.xlu0 %890
        %893 = vset.pattern.permute.xlu0 5
        %894 = vperm.xlu0 %893, %v335
        %v895 = vpop.permute.xlu0 %894
        %897 = vset.pattern.permute.xlu0 5
        %898 = vperm.xlu0 %897, %v336
        %v899 = vpop.permute.xlu0 %898
        %901 = vset.pattern.permute.xlu0 5
        %902 = vperm.xlu0 %901, %v337
        %v903 = vpop.permute.xlu0 %902
        %905 = vset.pattern.permute.xlu0 5
        %906 = vperm.xlu0 %905, %v338
        %v907 = vpop.permute.xlu0 %906
        %v909 = vmul.f32 %v873, %v887
        %v910 = vmul.f32 %v874, %v887
        %v911 = vmul.f32 %v875, %v891
        %v912 = vmul.f32 %v876, %v891
        %v913 = vmul.f32 %v877, %v895
        %v914 = vmul.f32 %v878, %v895
        %v915 = vmul.f32 %v879, %v899
        %v916 = vmul.f32 %v880, %v899
        %v917 = vmul.f32 %v881, %v903
        %v918 = vmul.f32 %v882, %v903
        %v919 = vmul.f32 %v883, %v907
        %v920 = vmul.f32 %v884, %v907
        %v921 = vadd.f32 %v820, %v909
        %v922 = vadd.f32 %v821, %v910
        %v923 = vadd.f32 %v822, %v911
        %v924 = vadd.f32 %v823, %v912
        %v925 = vadd.f32 %v824, %v913
        %v926 = vadd.f32 %v825, %v914
        %v927 = vadd.f32 %v826, %v915
        %v928 = vadd.f32 %v827, %v916
        %v929 = vadd.f32 %v828, %v917
        %v930 = vadd.f32 %v829, %v918
        %v931 = vadd.f32 %v830, %v919
        %v932 = vadd.f32 %v831, %v920
        %933 = vrot.lane.b32.xlu0 %v464, 127
        %v934 = vpop.permute.xlu0 %933
        %935 = vrot.lane.b32.xlu0 %v466, 127
        %v936 = vpop.permute.xlu0 %935
        %937 = vrot.lane.b32.xlu0 %v468, 127
        %v938 = vpop.permute.xlu0 %937
        %939 = vrot.lane.b32.xlu0 %v470, 127
        %v940 = vpop.permute.xlu0 %939
        %941 = vrot.lane.b32.xlu0 %v472, 127
        %v942 = vpop.permute.xlu0 %941
        %943 = vrot.lane.b32.xlu0 %v474, 127
        %v944 = vpop.permute.xlu0 %943
        %945 = vrot.lane.b32.xlu0 %v465, 127
        %v946 = vpop.permute.xlu0 %945
        %947 = vrot.lane.b32.xlu0 %v467, 127
        %v948 = vpop.permute.xlu0 %947
        %949 = vrot.lane.b32.xlu0 %v469, 127
        %v950 = vpop.permute.xlu0 %949
        %951 = vrot.lane.b32.xlu0 %v471, 127
        %v952 = vpop.permute.xlu0 %951
        %953 = vrot.lane.b32.xlu0 %v473, 127
        %v954 = vpop.permute.xlu0 %953
        %955 = vrot.lane.b32.xlu0 %v475, 127
        %v956 = vpop.permute.xlu0 %955
        %vm957 = vcmp.lt.s32.totalorder %v477, 127
        %v958 = vsel %vm957, %v934, %v946
        %v959 = vsel %vm957, %v936, %v948
        %v960 = vsel %vm957, %v938, %v950
        %v961 = vsel %vm957, %v940, %v952
        %v962 = vsel %vm957, %v942, %v954
        %v963 = vsel %vm957, %v944, %v956
        %v964 = vsel %vm957, %v946, %v934
        %v965 = vsel %vm957, %v948, %v936
        %v966 = vsel %vm957, %v950, %v938
        %v967 = vsel %vm957, %v952, %v940
        %v968 = vsel %vm957, %v954, %v942
        %v969 = vsel %vm957, %v956, %v944
        %v970 = vsel %vm487, 1, 0
        %v971 = vsel %vm488, 1, 0
        %vm972 = vcmp.eq.s32.totalorder %v970, 1
        %vm973 = vcmp.eq.s32.totalorder %v971, 1
        %v974 = vsel %vm972, %v958, 0.0
        %v975 = vsel %vm973, %v964, 0.0
        %v976 = vsel %vm972, %v959, 0.0
        %v977 = vsel %vm973, %v965, 0.0
        %v978 = vsel %vm972, %v960, 0.0
        %v979 = vsel %vm973, %v966, 0.0
        %v980 = vsel %vm972, %v961, 0.0
        %v981 = vsel %vm973, %v967, 0.0
        %v982 = vsel %vm972, %v962, 0.0
        %v983 = vsel %vm973, %v968, 0.0
        %v984 = vsel %vm972, %v963, 0.0
        %v985 = vsel %vm973, %v969, 0.0
        %986 = vset.pattern.permute.xlu0 7
        %987 = vperm.xlu0 %986, %v333
        %v988 = vpop.permute.xlu0 %987
        %990 = vset.pattern.permute.xlu0 7
        %991 = vperm.xlu0 %990, %v334
        %v992 = vpop.permute.xlu0 %991
        %994 = vset.pattern.permute.xlu0 7
        %995 = vperm.xlu0 %994, %v335
        %v996 = vpop.permute.xlu0 %995
        %998 = vset.pattern.permute.xlu0 7
        %999 = vperm.xlu0 %998, %v336
        %v1000 = vpop.permute.xlu0 %999
        %1002 = vset.pattern.permute.xlu0 7
        %1003 = vperm.xlu0 %1002, %v337
        %v1004 = vpop.permute.xlu0 %1003
        %1006 = vset.pattern.permute.xlu0 7
        %1007 = vperm.xlu0 %1006, %v338
        %v1008 = vpop.permute.xlu0 %1007
        %v1010 = vmul.f32 %v974, %v988
        %v1011 = vmul.f32 %v975, %v988
        %v1012 = vmul.f32 %v976, %v992
        %v1013 = vmul.f32 %v977, %v992
        %v1014 = vmul.f32 %v978, %v996
        %v1015 = vmul.f32 %v979, %v996
        %v1016 = vmul.f32 %v980, %v1000
        %v1017 = vmul.f32 %v981, %v1000
        %v1018 = vmul.f32 %v982, %v1004
        %v1019 = vmul.f32 %v983, %v1004
        %v1020 = vmul.f32 %v984, %v1008
        %v1021 = vmul.f32 %v985, %v1008
        %v1022 = vadd.f32 %v921, %v1010
        %v1023 = vadd.f32 %v922, %v1011
        %v1024 = vadd.f32 %v923, %v1012
        %v1025 = vadd.f32 %v924, %v1013
        %v1026 = vadd.f32 %v925, %v1014
        %v1027 = vadd.f32 %v926, %v1015
        %v1028 = vadd.f32 %v927, %v1016
        %v1029 = vadd.f32 %v928, %v1017
        %v1030 = vadd.f32 %v929, %v1018
        %v1031 = vadd.f32 %v930, %v1019
        %v1032 = vadd.f32 %v931, %v1020
        %v1033 = vadd.f32 %v932, %v1021
        %1034 = vrot.lane.b32.xlu0 %v464, 113
        %v1035 = vpop.permute.xlu0 %1034
        %1036 = vrot.lane.b32.xlu0 %v466, 113
        %v1037 = vpop.permute.xlu0 %1036
        %1038 = vrot.lane.b32.xlu0 %v468, 113
        %v1039 = vpop.permute.xlu0 %1038
        %1040 = vrot.lane.b32.xlu0 %v470, 113
        %v1041 = vpop.permute.xlu0 %1040
        %1042 = vrot.lane.b32.xlu0 %v472, 113
        %v1043 = vpop.permute.xlu0 %1042
        %1044 = vrot.lane.b32.xlu0 %v474, 113
        %v1045 = vpop.permute.xlu0 %1044
        %1046 = vrot.lane.b32.xlu0 %v465, 113
        %v1047 = vpop.permute.xlu0 %1046
        %1048 = vrot.lane.b32.xlu0 %v467, 113
        %v1049 = vpop.permute.xlu0 %1048
        %1050 = vrot.lane.b32.xlu0 %v469, 113
        %v1051 = vpop.permute.xlu0 %1050
        %1052 = vrot.lane.b32.xlu0 %v471, 113
        %v1053 = vpop.permute.xlu0 %1052
        %1054 = vrot.lane.b32.xlu0 %v473, 113
        %v1055 = vpop.permute.xlu0 %1054
        %1056 = vrot.lane.b32.xlu0 %v475, 113
        %v1057 = vpop.permute.xlu0 %1056
        %vm1058 = vcmp.lt.s32.totalorder %v477, 113
        %v1059 = vsel %vm1058, %v1035, %v1047
        %v1060 = vsel %vm1058, %v1037, %v1049
        %v1061 = vsel %vm1058, %v1039, %v1051
        %v1062 = vsel %vm1058, %v1041, %v1053
        %v1063 = vsel %vm1058, %v1043, %v1055
        %v1064 = vsel %vm1058, %v1045, %v1057
        %v1065 = vsel %vm1058, %v1047, %v1035
        %v1066 = vsel %vm1058, %v1049, %v1037
        %v1067 = vsel %vm1058, %v1051, %v1039
        %v1068 = vsel %vm1058, %v1053, %v1041
        %v1069 = vsel %vm1058, %v1055, %v1043
        %v1070 = vsel %vm1058, %v1057, %v1045
        %vm1071 = vmand %vm483, %vm485
        %vm1072 = vmand %vm484, %vm486
        %v1073 = vsel %vm1071, 1, 0
        %v1074 = vsel %vm1072, 1, 0
        %vm1075 = vcmp.eq.s32.totalorder %v1073, 1
        %vm1076 = vcmp.eq.s32.totalorder %v1074, 1
        %v1077 = vsel %vm1075, %v1059, 0.0
        %v1078 = vsel %vm1076, %v1065, 0.0
        %v1079 = vsel %vm1075, %v1060, 0.0
        %v1080 = vsel %vm1076, %v1066, 0.0
        %v1081 = vsel %vm1075, %v1061, 0.0
        %v1082 = vsel %vm1076, %v1067, 0.0
        %v1083 = vsel %vm1075, %v1062, 0.0
        %v1084 = vsel %vm1076, %v1068, 0.0
        %v1085 = vsel %vm1075, %v1063, 0.0
        %v1086 = vsel %vm1076, %v1069, 0.0
        %v1087 = vsel %vm1075, %v1064, 0.0
        %v1088 = vsel %vm1076, %v1070, 0.0
        %1089 = vset.pattern.permute.xlu0 8
        %1090 = vperm.xlu0 %1089, %v333
        %v1091 = vpop.permute.xlu0 %1090
        %1093 = vset.pattern.permute.xlu0 8
        %1094 = vperm.xlu0 %1093, %v334
        %v1095 = vpop.permute.xlu0 %1094
        %1097 = vset.pattern.permute.xlu0 8
        %1098 = vperm.xlu0 %1097, %v335
        %v1099 = vpop.permute.xlu0 %1098
        %1101 = vset.pattern.permute.xlu0 8
        %1102 = vperm.xlu0 %1101, %v336
        %v1103 = vpop.permute.xlu0 %1102
        %1105 = vset.pattern.permute.xlu0 8
        %1106 = vperm.xlu0 %1105, %v337
        %v1107 = vpop.permute.xlu0 %1106
        %1109 = vset.pattern.permute.xlu0 8
        %1110 = vperm.xlu0 %1109, %v338
        %v1111 = vpop.permute.xlu0 %1110
        %v1113 = vmul.f32 %v1077, %v1091
        %v1114 = vmul.f32 %v1078, %v1091
        %v1115 = vmul.f32 %v1079, %v1095
        %v1116 = vmul.f32 %v1080, %v1095
        %v1117 = vmul.f32 %v1081, %v1099
        %v1118 = vmul.f32 %v1082, %v1099
        %v1119 = vmul.f32 %v1083, %v1103
        %v1120 = vmul.f32 %v1084, %v1103
        %v1121 = vmul.f32 %v1085, %v1107
        %v1122 = vmul.f32 %v1086, %v1107
        %v1123 = vmul.f32 %v1087, %v1111
        %v1124 = vmul.f32 %v1088, %v1111
        %v1125 = vadd.f32 %v1022, %v1113
        %v1126 = vadd.f32 %v1023, %v1114
        %v1127 = vadd.f32 %v1024, %v1115
        %v1128 = vadd.f32 %v1025, %v1116
        %v1129 = vadd.f32 %v1026, %v1117
        %v1130 = vadd.f32 %v1027, %v1118
        %v1131 = vadd.f32 %v1028, %v1119
        %v1132 = vadd.f32 %v1029, %v1120
        %v1133 = vadd.f32 %v1030, %v1121
        %v1134 = vadd.f32 %v1031, %v1122
        %v1135 = vadd.f32 %v1032, %v1123
        %v1136 = vadd.f32 %v1033, %v1124
        %1137 = vrot.lane.b32.xlu0 %v464, 112
        %v1138 = vpop.permute.xlu0 %1137
        %1139 = vrot.lane.b32.xlu0 %v466, 112
        %v1140 = vpop.permute.xlu0 %1139
        %1141 = vrot.lane.b32.xlu0 %v468, 112
        %v1142 = vpop.permute.xlu0 %1141
        %1143 = vrot.lane.b32.xlu0 %v470, 112
        %v1144 = vpop.permute.xlu0 %1143
        %1145 = vrot.lane.b32.xlu0 %v472, 112
        %v1146 = vpop.permute.xlu0 %1145
        %1147 = vrot.lane.b32.xlu0 %v474, 112
        %v1148 = vpop.permute.xlu0 %1147
        %1149 = vrot.lane.b32.xlu0 %v465, 112
        %v1150 = vpop.permute.xlu0 %1149
        %1151 = vrot.lane.b32.xlu0 %v467, 112
        %v1152 = vpop.permute.xlu0 %1151
        %1153 = vrot.lane.b32.xlu0 %v469, 112
        %v1154 = vpop.permute.xlu0 %1153
        %1155 = vrot.lane.b32.xlu0 %v471, 112
        %v1156 = vpop.permute.xlu0 %1155
        %1157 = vrot.lane.b32.xlu0 %v473, 112
        %v1158 = vpop.permute.xlu0 %1157
        %1159 = vrot.lane.b32.xlu0 %v475, 112
        %v1160 = vpop.permute.xlu0 %1159
        %vm1161 = vcmp.lt.s32.totalorder %v477, 112
        %v1162 = vsel %vm1161, %v1138, %v1150
        %v1163 = vsel %vm1161, %v1140, %v1152
        %v1164 = vsel %vm1161, %v1142, %v1154
        %v1165 = vsel %vm1161, %v1144, %v1156
        %v1166 = vsel %vm1161, %v1146, %v1158
        %v1167 = vsel %vm1161, %v1148, %v1160
        %v1168 = vsel %vm1161, %v1150, %v1138
        %v1169 = vsel %vm1161, %v1152, %v1140
        %v1170 = vsel %vm1161, %v1154, %v1142
        %v1171 = vsel %vm1161, %v1156, %v1144
        %v1172 = vsel %vm1161, %v1158, %v1146
        %v1173 = vsel %vm1161, %v1160, %v1148
        %v1174 = vsel %vm483, 1, 0
        %v1175 = vsel %vm484, 1, 0
        %vm1176 = vcmp.eq.s32.totalorder %v1174, 1
        %vm1177 = vcmp.eq.s32.totalorder %v1175, 1
        %v1178 = vsel %vm1176, %v1162, 0.0
        %v1179 = vsel %vm1177, %v1168, 0.0
        %v1180 = vsel %vm1176, %v1163, 0.0
        %v1181 = vsel %vm1177, %v1169, 0.0
        %v1182 = vsel %vm1176, %v1164, 0.0
        %v1183 = vsel %vm1177, %v1170, 0.0
        %v1184 = vsel %vm1176, %v1165, 0.0
        %v1185 = vsel %vm1177, %v1171, 0.0
        %v1186 = vsel %vm1176, %v1166, 0.0
        %v1187 = vsel %vm1177, %v1172, 0.0
        %v1188 = vsel %vm1176, %v1167, 0.0
        %v1189 = vsel %vm1177, %v1173, 0.0
        %1190 = vset.pattern.permute.xlu0 9
        %1191 = vperm.xlu0 %1190, %v333
        %v1192 = vpop.permute.xlu0 %1191
        %1194 = vset.pattern.permute.xlu0 9
        %1195 = vperm.xlu0 %1194, %v334
        %v1196 = vpop.permute.xlu0 %1195
        %1198 = vset.pattern.permute.xlu0 9
        %1199 = vperm.xlu0 %1198, %v335
        %v1200 = vpop.permute.xlu0 %1199
        %1202 = vset.pattern.permute.xlu0 9
        %1203 = vperm.xlu0 %1202, %v336
        %v1204 = vpop.permute.xlu0 %1203
        %1206 = vset.pattern.permute.xlu0 9
        %1207 = vperm.xlu0 %1206, %v337
        %v1208 = vpop.permute.xlu0 %1207
        %1210 = vset.pattern.permute.xlu0 9
        %1211 = vperm.xlu0 %1210, %v338
        %v1212 = vpop.permute.xlu0 %1211
        %v1214 = vmul.f32 %v1178, %v1192
        %v1215 = vmul.f32 %v1179, %v1192
        %v1216 = vmul.f32 %v1180, %v1196
        %v1217 = vmul.f32 %v1181, %v1196
        %v1218 = vmul.f32 %v1182, %v1200
        %v1219 = vmul.f32 %v1183, %v1200
        %v1220 = vmul.f32 %v1184, %v1204
        %v1221 = vmul.f32 %v1185, %v1204
        %v1222 = vmul.f32 %v1186, %v1208
        %v1223 = vmul.f32 %v1187, %v1208
        %v1224 = vmul.f32 %v1188, %v1212
        %v1225 = vmul.f32 %v1189, %v1212
        %v1226 = vadd.f32 %v1125, %v1214
        %v1227 = vadd.f32 %v1126, %v1215
        %v1228 = vadd.f32 %v1127, %v1216
        %v1229 = vadd.f32 %v1128, %v1217
        %v1230 = vadd.f32 %v1129, %v1218
        %v1231 = vadd.f32 %v1130, %v1219
        %v1232 = vadd.f32 %v1131, %v1220
        %v1233 = vadd.f32 %v1132, %v1221
        %v1234 = vadd.f32 %v1133, %v1222
        %v1235 = vadd.f32 %v1134, %v1223
        %v1236 = vadd.f32 %v1135, %v1224
        %v1237 = vadd.f32 %v1136, %v1225
        %1238 = vrot.lane.b32.xlu0 %v464, 111
        %v1239 = vpop.permute.xlu0 %1238
        %1240 = vrot.lane.b32.xlu0 %v466, 111
        %v1241 = vpop.permute.xlu0 %1240
        %1242 = vrot.lane.b32.xlu0 %v468, 111
        %v1243 = vpop.permute.xlu0 %1242
        %1244 = vrot.lane.b32.xlu0 %v470, 111
        %v1245 = vpop.permute.xlu0 %1244
        %1246 = vrot.lane.b32.xlu0 %v472, 111
        %v1247 = vpop.permute.xlu0 %1246
        %1248 = vrot.lane.b32.xlu0 %v474, 111
        %v1249 = vpop.permute.xlu0 %1248
        %1250 = vrot.lane.b32.xlu0 %v465, 111
        %v1251 = vpop.permute.xlu0 %1250
        %1252 = vrot.lane.b32.xlu0 %v467, 111
        %v1253 = vpop.permute.xlu0 %1252
        %1254 = vrot.lane.b32.xlu0 %v469, 111
        %v1255 = vpop.permute.xlu0 %1254
        %1256 = vrot.lane.b32.xlu0 %v471, 111
        %v1257 = vpop.permute.xlu0 %1256
        %1258 = vrot.lane.b32.xlu0 %v473, 111
        %v1259 = vpop.permute.xlu0 %1258
        %1260 = vrot.lane.b32.xlu0 %v475, 111
        %v1261 = vpop.permute.xlu0 %1260
        %vm1262 = vcmp.lt.s32.totalorder %v477, 111
        %v1263 = vsel %vm1262, %v1239, %v1251
        %v1264 = vsel %vm1262, %v1241, %v1253
        %v1265 = vsel %vm1262, %v1243, %v1255
        %v1266 = vsel %vm1262, %v1245, %v1257
        %v1267 = vsel %vm1262, %v1247, %v1259
        %v1268 = vsel %vm1262, %v1249, %v1261
        %v1269 = vsel %vm1262, %v1251, %v1239
        %v1270 = vsel %vm1262, %v1253, %v1241
        %v1271 = vsel %vm1262, %v1255, %v1243
        %v1272 = vsel %vm1262, %v1257, %v1245
        %v1273 = vsel %vm1262, %v1259, %v1247
        %v1274 = vsel %vm1262, %v1261, %v1249
        %vm1275 = vmand %vm483, %vm487
        %vm1276 = vmand %vm484, %vm488
        %v1277 = vsel %vm1275, 1, 0
        %v1278 = vsel %vm1276, 1, 0
        %vm1279 = vcmp.eq.s32.totalorder %v1277, 1
        %vm1280 = vcmp.eq.s32.totalorder %v1278, 1
        %v1281 = vsel %vm1279, %v1263, 0.0
        %v1282 = vsel %vm1280, %v1269, 0.0
        %v1283 = vsel %vm1279, %v1264, 0.0
        %v1284 = vsel %vm1280, %v1270, 0.0
        %v1285 = vsel %vm1279, %v1265, 0.0
        %v1286 = vsel %vm1280, %v1271, 0.0
        %v1287 = vsel %vm1279, %v1266, 0.0
        %v1288 = vsel %vm1280, %v1272, 0.0
        %v1289 = vsel %vm1279, %v1267, 0.0
        %v1290 = vsel %vm1280, %v1273, 0.0
        %v1291 = vsel %vm1279, %v1268, 0.0
        %v1292 = vsel %vm1280, %v1274, 0.0
        %1293 = vset.pattern.permute.xlu0 10
        %1294 = vperm.xlu0 %1293, %v333
        %v1295 = vpop.permute.xlu0 %1294
        %1297 = vset.pattern.permute.xlu0 10
        %1298 = vperm.xlu0 %1297, %v334
        %v1299 = vpop.permute.xlu0 %1298
        %1301 = vset.pattern.permute.xlu0 10
        %1302 = vperm.xlu0 %1301, %v335
        %v1303 = vpop.permute.xlu0 %1302
        %1305 = vset.pattern.permute.xlu0 10
        %1306 = vperm.xlu0 %1305, %v336
        %v1307 = vpop.permute.xlu0 %1306
        %1309 = vset.pattern.permute.xlu0 10
        %1310 = vperm.xlu0 %1309, %v337
        %v1311 = vpop.permute.xlu0 %1310
        %1313 = vset.pattern.permute.xlu0 10
        %1314 = vperm.xlu0 %1313, %v338
        %v1315 = vpop.permute.xlu0 %1314
        %v1317 = vmul.f32 %v1281, %v1295
        %v1318 = vmul.f32 %v1282, %v1295
        %v1319 = vmul.f32 %v1283, %v1299
        %v1320 = vmul.f32 %v1284, %v1299
        %v1321 = vmul.f32 %v1285, %v1303
        %v1322 = vmul.f32 %v1286, %v1303
        %v1323 = vmul.f32 %v1287, %v1307
        %v1324 = vmul.f32 %v1288, %v1307
        %v1325 = vmul.f32 %v1289, %v1311
        %v1326 = vmul.f32 %v1290, %v1311
        %v1327 = vmul.f32 %v1291, %v1315
        %v1328 = vmul.f32 %v1292, %v1315
        %v1329 = vadd.f32 %v1226, %v1317
        %v1330 = vadd.f32 %v1227, %v1318
        %v1331 = vadd.f32 %v1228, %v1319
        %v1332 = vadd.f32 %v1229, %v1320
        %v1333 = vadd.f32 %v1230, %v1321
        %v1334 = vadd.f32 %v1231, %v1322
        %v1335 = vadd.f32 %v1232, %v1323
        %v1336 = vadd.f32 %v1233, %v1324
        %v1337 = vadd.f32 %v1234, %v1325
        %v1338 = vadd.f32 %v1235, %v1326
        %v1339 = vadd.f32 %v1236, %v1327
        %v1340 = vadd.f32 %v1237, %v1328
        %1341 = vset.pattern.permute.xlu0 1
        %1342 = vperm.xlu0 %1341, %v333
        %v1343 = vpop.permute.xlu0 %1342
        %1345 = vset.pattern.permute.xlu0 1
        %1346 = vperm.xlu0 %1345, %v334
        %v1347 = vpop.permute.xlu0 %1346
        %1349 = vset.pattern.permute.xlu0 1
        %1350 = vperm.xlu0 %1349, %v335
        %v1351 = vpop.permute.xlu0 %1350
        %1353 = vset.pattern.permute.xlu0 1
        %1354 = vperm.xlu0 %1353, %v336
        %v1355 = vpop.permute.xlu0 %1354
        %1357 = vset.pattern.permute.xlu0 1
        %1358 = vperm.xlu0 %1357, %v337
        %v1359 = vpop.permute.xlu0 %1358
        %1361 = vset.pattern.permute.xlu0 1
        %1362 = vperm.xlu0 %1361, %v338
        %v1363 = vpop.permute.xlu0 %1362
        %v1365 = vadd.f32 %v1329, %v1343
        %v1366 = vadd.f32 %v1330, %v1343
        %v1367 = vadd.f32 %v1331, %v1347
        %v1368 = vadd.f32 %v1332, %v1347
        %v1369 = vadd.f32 %v1333, %v1351
        %v1370 = vadd.f32 %v1334, %v1351
        %v1371 = vadd.f32 %v1335, %v1355
        %v1372 = vadd.f32 %v1336, %v1355
        %v1373 = vadd.f32 %v1337, %v1359
        %v1374 = vadd.f32 %v1338, %v1359
        %v1375 = vadd.f32 %v1339, %v1363
        %v1376 = vadd.f32 %v1340, %v1363
        %v1377 = vmax.f32 %v1365, 0.0
        %v1378 = vmax.f32 %v1366, 0.0
        %v1379 = vmax.f32 %v1367, 0.0
        %v1380 = vmax.f32 %v1368, 0.0
        %v1381 = vmax.f32 %v1369, 0.0
        %v1382 = vmax.f32 %v1370, 0.0
        %v1383 = vmax.f32 %v1371, 0.0
        %v1384 = vmax.f32 %v1372, 0.0
        %v1385 = vmax.f32 %v1373, 0.0
        %v1386 = vmax.f32 %v1374, 0.0
        %v1387 = vmax.f32 %v1375, 0.0
        %v1388 = vmax.f32 %v1376, 0.0
        %1389 = vmatpush.xpose.msra.mxu0 0.0
        %1390 = vmatpush.xpose.msra.mxu0 0.0
        %1391 = vmatpush.xpose.msra.mxu0 0.0
        %1392 = vmatpush.xpose.msra.mxu0 0.0
        %1393 = vmatpush.xpose.msra.mxu0 0.0
        %1394 = vmatpush.xpose.msra.mxu0 0.0
        %1395 = vmatpush.xpose.msra.mxu0 0.0
        %1396 = vmatpush.xpose.msra.mxu0 0.0
        %1397 = vmatpush.xpose.msra.mxu0 0.0
        %1398 = vmatpush.xpose.msra.mxu0 0.0
        %1399 = vmatpush.xpose.msra.mxu0 %v1387
        %1400 = vmatpush.xpose.msra.mxu0 %v1385
        %1401 = vmatpush.xpose.msra.mxu0 %v1383
        %1402 = vmatpush.xpose.msra.mxu0 %v1381
        %1403 = vmatpush.xpose.msra.mxu0 %v1379
        %1404 = vmatpush.xpose.msra.mxu0 %v1377
        %1405 = vmatmul.f32.gmra.mxu0 1.0
        %v1406 = vpop.f32.mrf.mxu0
        %v1407 = vadd.f32 0.0, %v1406
        %1408 = vdwg.mxu0
        %1409 = vmatpush.xpose.msra.mxu0 0.0
        %1410 = vmatpush.xpose.msra.mxu0 0.0
        %1411 = vmatpush.xpose.msra.mxu0 0.0
        %1412 = vmatpush.xpose.msra.mxu0 0.0
        %1413 = vmatpush.xpose.msra.mxu0 0.0
        %1414 = vmatpush.xpose.msra.mxu0 0.0
        %1415 = vmatpush.xpose.msra.mxu0 0.0
        %1416 = vmatpush.xpose.msra.mxu0 0.0
        %1417 = vmatpush.xpose.msra.mxu0 0.0
        %1418 = vmatpush.xpose.msra.mxu0 0.0
        %1419 = vmatpush.xpose.msra.mxu0 %v1388
        %1420 = vmatpush.xpose.msra.mxu0 %v1386
        %1421 = vmatpush.xpose.msra.mxu0 %v1384
        %1422 = vmatpush.xpose.msra.mxu0 %v1382
        %1423 = vmatpush.xpose.msra.mxu0 %v1380
        %1424 = vmatpush.xpose.msra.mxu0 %v1378
        %1425 = vmatmul.f32.gmra.mxu0 1.0
        %v1426 = vpop.f32.mrf.mxu0
        %v1427 = vadd.f32 %v1407, %v1426
        %1428 = vdwg.mxu0
        %v1429 = vmul.f32 %v1427, 0.00390625
        %v1430 = vld [vmem:[%s3] sm:$0xff]
        %v1431 = vld [vmem:[%s3 + $0x8] sm:$0xff]
        %v1432 = vld [vmem:[%s3 + $0x10] sm:$0xff]
        %v1433 = vld [vmem:[%s3 + $0x18] sm:$0xff]
        %v1434 = vld [vmem:[%s3 + $0x20] sm:$0xff]
        %v1435 = vld [vmem:[%s3 + $0x28] sm:$0xff]
        %v1436 = vld [vmem:[%s4] sm:$0x1]
        %vm1437 = vcmask 392192
        %v1439 = vsel %vm1437, %v1429, 0
        %1441 = vmatpush.msra.mxu0 0.0
        %1442 = vmatpush.msra.mxu0 0.0
        %1443 = vmatpush.msra.mxu0 0.0
        %1444 = vmatpush.msra.mxu0 0.0
        %1445 = vmatpush.msra.mxu0 0.0
        %1446 = vmatpush.msra.mxu0 0.0
        %1447 = vmatpush.msra.mxu0 0.0
        %1448 = vmatpush.msra.mxu0 0.0
        %1449 = vmatpush.msra.mxu0 0.0
        %1450 = vmatpush.msra.mxu0 0.0
        %1451 = vmatpush.msra.mxu0 %v1435
        %1452 = vmatpush.msra.mxu0 %v1434
        %1453 = vmatpush.msra.mxu0 %v1433
        %1454 = vmatpush.msra.mxu0 %v1432
        %1455 = vmatpush.msra.mxu0 %v1431
        %1456 = vmatpush.msra.mxu0 %v1430
        %1457 = vmatmul.f32.gmra.mxu0 %v1439
        %v1458 = vpop.f32.mrf.mxu0
        %v1459 = vadd.f32 %v1436, %v1458
        %1460 = vdwg.mxu0
        %v1461 = vmax.f32 %v1459, 0.0
        %v1462 = vld [vmem:[%s5] sm:$0x3]
        %v1463 = vld [vmem:[%s6] sm:$0x1]
        %vm1464 = vcmask 15360
        %v1466 = vsel %vm1464, %v1461, 0
        %vm1468 = vcmask 1041408
        %v1470 = vsel %vm1468, %v1462, 0
        %1472 = vmatpush.msra.mxu0 0.0
        %1473 = vmatpush.msra.mxu0 0.0
        %1474 = vmatpush.msra.mxu0 0.0
        %1475 = vmatpush.msra.mxu0 0.0
        %1476 = vmatpush.msra.mxu0 0.0
        %1477 = vmatpush.msra.mxu0 0.0
        %1478 = vmatpush.msra.mxu0 0.0
        %1479 = vmatpush.msra.mxu0 0.0
        %1480 = vmatpush.msra.mxu0 0.0
        %1481 = vmatpush.msra.mxu0 0.0
        %1482 = vmatpush.msra.mxu0 0.0
        %1483 = vmatpush.msra.mxu0 0.0
        %1484 = vmatpush.msra.mxu0 0.0
        %1485 = vmatpush.msra.mxu0 0.0
        %1486 = vmatpush.msra.mxu0 0.0
        %1487 = vmatpush.msra.mxu0 %v1470
        %1488 = vmatmul.f32.gmra.mxu0 %v1466
        %v1489 = vpop.f32.mrf.mxu0
        %v1490 = vadd.f32 %v1463, %v1489
        %1491 = vdwg.mxu0
        %v1492 = vxor.u32 %v1490, 2147483648
        %v1493 = vmul.f32 %v1492, 1.442695
        %v1494 = vpow.pop %v1493
        %v1495 = vadd.f32 %v1494, 1.0
        %v1496 = vrcp.pop %v1495
        %v1497 = vmul.f32 %v1495, %v1496
        %v1498 = vsub.f32 1.0, %v1497
        %v1499 = vmul.f32 %v1496, %v1498
        %v1500 = vadd.f32 %v1496, %v1499
        %vm1501 = vweird.f32 %v1495
        %vm1502 = vweird.f32 %v1496
        %vm1503 = vmor %vm1501, %vm1502
        %v1504 = vsel %vm1503, %v1496, %v1500
        %v1505 = vand.u32 2147483647, %v1495
        %vm1506 = vcmp.eq.f32.partialorder %v1505, 8.507059e+37
        %v1507 = vand.u32 %v1495, 2147483648
        %v1508 = vor.u32 1.1754944e-38, %v1507
        %v1509 = vsel %vm1506, %v1508, %v1504
        %v1510 = vmul.f32 1.0, %v1509
        %v1511 = vld [vmem:[%s7] sm:$0xff]
        %v1512 = vperm.slane %v1510, 0
        %v1513 = vmul.f32 %v1511, %v1512
        %v1514 = vld [vmem:[%s8] sm:$0xff]
        %1516 = vset.pattern.permute.xlu0 0
        %1517 = vperm.xlu0 %1516, %v1514
        %v1518 = vpop.permute.xlu0 %1517
        %v1521 = vsel %vm1437, %v1513, 0
        %1523 = vmatpush.msra.mxu0 0.0
        %1524 = vmatpush.msra.mxu0 0.0
        %1525 = vmatpush.msra.mxu0 0.0
        %1526 = vmatpush.msra.mxu0 0.0
        %1527 = vmatpush.msra.mxu0 0.0
        %1528 = vmatpush.msra.mxu0 0.0
        %1529 = vmatpush.msra.mxu0 0.0
        %1530 = vmatpush.msra.mxu0 0.0
        %1531 = vmatpush.msra.mxu0 0.0
        %1532 = vmatpush.msra.mxu0 0.0
        %1533 = vmatpush.msra.mxu0 %v1387
        %1534 = vmatpush.msra.mxu0 %v1385
        %1535 = vmatpush.msra.mxu0 %v1383
        %1536 = vmatpush.msra.mxu0 %v1381
        %1537 = vmatpush.msra.mxu0 %v1379
        %1538 = vmatpush.msra.mxu0 %v1377
        %1539 = vmatmul.f32.gmra.mxu0 %v1521
        %v1540 = vpop.f32.mrf.mxu0
        %v1541 = vadd.f32 %v1518, %v1540
        %1542 = vdwg.mxu0
        %1543 = vmatpush.msra.mxu0 0.0
        %1544 = vmatpush.msra.mxu0 0.0
        %1545 = vmatpush.msra.mxu0 0.0
        %1546 = vmatpush.msra.mxu0 0.0
        %1547 = vmatpush.msra.mxu0 0.0
        %1548 = vmatpush.msra.mxu0 0.0
        %1549 = vmatpush.msra.mxu0 0.0
        %1550 = vmatpush.msra.mxu0 0.0
        %1551 = vmatpush.msra.mxu0 0.0
        %1552 = vmatpush.msra.mxu0 0.0
        %1553 = vmatpush.msra.mxu0 %v1388
        %1554 = vmatpush.msra.mxu0 %v1386
        %1555 = vmatpush.msra.mxu0 %v1384
        %1556 = vmatpush.msra.mxu0 %v1382
        %1557 = vmatpush.msra.mxu0 %v1380
        %1558 = vmatpush.msra.mxu0 %v1378
        %1559 = vmatmul.f32.gmra.mxu0 %v1521
        %v1560 = vpop.f32.mrf.mxu0
        %v1561 = vadd.f32 %v1518, %v1560
        %1562 = vdwg.mxu0
        %v1563 = vadd.f32 %v1541, %v331
        %v1564 = vadd.f32 %v1561, %v332
        %1565 = vst [vmem:[%s325] sm:$0xff] %v1563
        %1566 = vst [vmem:[%s325 + $0x8] sm:$0xff] %v1564
        %s1567 = sand.u32 %s225, 1
        %s1568 = scalar_lea.sflag [#allocation3], %s1567
        %s1569 = sand.u32 %s225, 1
        %s1570 = smul.addr %s1569, 16
        %s1571 = scalar_lea.vmem [#allocation2], %s1570
        // Predicated region
        $region57: #{tpu_custom_call.1} parent=55 // pred_check
          %p1572 = pneg %p235
        $region58: #{tpu_custom_call.1} parent=55 // pred_check_branch
          %1574 = sbr.rel (%p1572) target = $region60
        $region59: #{tpu_custom_call.1} parent=55 // pred_region
          %1576 = vsyncadd %s1568, 0
          %s1577 = smul.addr %s23, 2
          %s1578 = smul.addr %s1577, 8
          %s1579 = scalar_lea.hbm %s9, %s1578
          %s1581 = sshll.u32 %s1571, 4
          %s1582 = int_to_ptr.vmem [resolvable:$true] %s1581
          %s1583 = sshll.u32 %s1579, 4
          %s1584 = int_to_ptr.hbm [resolvable:$true] %s1583
          %1586 = dma.vmem_to_hbm [thread:$0]  %s1582, 256, %s1584, %s1568
        $region60: #{tpu_custom_call.1} parent=55 // pred_fallthru
          _
      $region56: #{tpu_custom_call.1} parent=5 // pred_fallthru
        _
      %p1587 = scmp.le.s32.totalorder 2, %s18
      // Predicated region
      $region61: #{tpu_custom_call.1} parent=5 // pred_check
        %p1588 = pneg %p1587
      $region62: #{tpu_custom_call.1} parent=5 // pred_check_branch
        %1590 = sbr.rel (%p1588) target = $region64
      $region63: #{tpu_custom_call.1} parent=5 // pred_region
        %s1591 = ssub.s32 %s18, 2
        // Predicated region
        $region65: #{tpu_custom_call.1} parent=63 // pred_check
          %p1592 = pneg %p241
        $region66: #{tpu_custom_call.1} parent=63 // pred_check_branch
          %1594 = sbr.rel (%p1592) target = $region68
        $region67: #{tpu_custom_call.1} parent=63 // pred_region
          %s1595 = sand.u32 %s226, 1
          %s1596 = scalar_lea.sflag [#allocation3], %s1595
          %s1597 = sand.u32 %s226, 1
          %s1598 = smul.addr %s1597, 16
          %s1599 = scalar_lea.vmem [#allocation2], %s1598
          %1601 = dma.done %s1596, 256
        $region68: #{tpu_custom_call.1} parent=63 // pred_fallthru
          _
      $region64: #{tpu_custom_call.1} parent=5 // pred_fallthru
        _
    $region6: #{tpu_custom_call.1} parent=1 // loop_footer
      %s22 = sadd.s32 1, %s18
    $region7: #{tpu_custom_call.1} parent=1 // loop_footer_branch
      %17 = sbr.rel target = $region3
    $region8: #{tpu_custom_call.1} parent=1 // loop_exit
      _
    %1602 = vsyncpa [#allocation3], 1
    %s1603 = scalar_lea.sflag [#allocation3], 1
    %1604 = vsyncpa %s1603, 1

</llo_original>
